<compile_context>
chip_gen: v5e
topology: v5e:2x2
jax: 0.10.0
libtpu: 0.0.40
codegen_flags: <defaults>
</compile_context>

<pallas_src>
import functools

import numpy as np

import jax
import jax.numpy as jnp
from jax.experimental import pallas as pl
from jax.experimental.pallas import tpu as pltpu

LANE = 128
BN_EPS = 1e-5        # nn.BatchNorm1d / MinkowskiBatchNorm eps
NORM_EPS = 1e-12     # F.normalize eps
VMEM_LIMIT = 48 * 1024 * 1024   # leaves headroom even on v7x's 64 MiB/TC


def _round_up(x, m):
    return (x + m - 1) // m * m


def _pad2(x, rows, cols):
    out = jnp.zeros((rows, cols), jnp.float32)
    return out.at[: x.shape[0], : x.shape[1]].set(x.astype(jnp.float32))


# -----------------------------------------------------------------------------
# intra_pos_mlp: Linear(3,3)/BN/ReLU/Linear(3,C)/BN/ReLU/Linear(C,C).
# Kept in plain JAX: a 3-wide contraction wastes the MXU and its BatchNorm
# statistics couple every row.
# -----------------------------------------------------------------------------
def intra_pos_mlp(points, lp):
    def bn_relu(x):
        mu = jnp.mean(x, axis=0, keepdims=True)
        var = jnp.mean((x - mu) ** 2, axis=0, keepdims=True)
        return jnp.maximum((x - mu) * jax.lax.rsqrt(var + BN_EPS), 0.0)

    h = bn_relu(points @ lp["w1"])
    h = bn_relu(h @ lp["w2"])
    return h @ lp["w3"] + lp["b3"]


# -----------------------------------------------------------------------------
# Kernel 1: (fused BN affine + ReLU) -> + pos-enc -> fused Q|V projection ->
# per-head L2 normalisation of Q.  Grid: point tiles ("parallel").
# -----------------------------------------------------------------------------
def proj_kernel(a_ref, b_ref, scale_ref, shift_ref, wqv_ref, bqv_ref, pp_ref,
                nq_ref, v_ref, *, apply_relu, hcp, compute_dtype):
    x = a_ref[...].astype(jnp.float32) * scale_ref[...] + shift_ref[...]
    if apply_relu:
        x = jnp.maximum(x, 0.0)
    x = x + b_ref[...]                                   # + intra positional enc

    qv = jnp.dot(x.astype(compute_dtype), wqv_ref[...],
                 preferred_element_type=jnp.float32) + bqv_ref[...]
    q = qv[:, :hcp]
    v = qv[:, hcp:]

    # Per-head sum of squares via a single f32 matmul against the constant
    # block-diagonal PP = pool @ pool^T (already broadcast back per channel).
    # x / max(||x||, eps) == x * rsqrt(max(ss, eps^2));  rsqrt runs on the EUP.
    ss = jnp.dot(q * q, pp_ref[...], preferred_element_type=jnp.float32)
    inv = jax.lax.rsqrt(jnp.maximum(ss, NORM_EPS * NORM_EPS))

    nq_ref[...] = (q * inv).astype(nq_ref.dtype)
    v_ref[...] = v.astype(v_ref.dtype)


def _proj_call(a, b, scale, shift, wqv, bqv, pp_f32,
               *, tq, apply_relu, hcp, compute_dtype, dim_sem):
    n_pad, cp = a.shape
    kern = functools.partial(proj_kernel, apply_relu=apply_relu, hcp=hcp,
                             compute_dtype=compute_dtype)
    return pl.pallas_call(
        kern,
        out_shape=(jax.ShapeDtypeStruct((n_pad, hcp), compute_dtype),
                   jax.ShapeDtypeStruct((n_pad, hcp), compute_dtype)),
        grid=(n_pad // tq,),
        in_specs=[
            pl.BlockSpec((tq, cp), lambda i: (i, 0)),
            pl.BlockSpec((tq, cp), lambda i: (i, 0)),
            pl.BlockSpec((1, cp), lambda i: (0, 0)),
            pl.BlockSpec((1, cp), lambda i: (0, 0)),
            pl.BlockSpec(wqv.shape, lambda i: (0, 0)),
            pl.BlockSpec(bqv.shape, lambda i: (0, 0)),
            pl.BlockSpec(pp_f32.shape, lambda i: (0, 0)),
        ],
        out_specs=(pl.BlockSpec((tq, hcp), lambda i: (i, 0)),
                   pl.BlockSpec((tq, hcp), lambda i: (i, 0))),
        compiler_params=pltpu.CompilerParams(
            dimension_semantics=dim_sem,
            vmem_limit_bytes=VMEM_LIMIT),
    )(a, b, scale, shift, wqv, bqv, pp_f32)


# -----------------------------------------------------------------------------
# Kernel 2: dot-product attention + scalar-attention segment-sum scatter +
# to_out linear + per-tile BN partial sums.
# Grid: (query tiles "parallel", pair blocks "arbitrary").  The pair blocks a
# query tile must visit are looked up in a scalar-prefetched block table; the
# per-pair query / pos-enc rows are gathered IN-KERNEL via one-hot matmuls.
# -----------------------------------------------------------------------------
def attn_kernel(tbl_ref, qidr_ref, qidc_ref, kid_ref, nq_ref, vg_ref,
                pe_ref, pp_ref, wo_ref, bo_ref,
                y_ref, psum_ref, psq_ref, acc_ref,
                *, tq, kp, n_valid, sent_blk, m_steps, compute_dtype):
    i = pl.program_id(0)
    s = pl.program_id(1)
    tm = qidr_ref.shape[1]

    @pl.when(s == 0)
    def _():
        acc_ref[...] = jnp.zeros_like(acc_ref)

    blk = tbl_ref[i * m_steps + s]

    # Skip sentinel / padded pair-block steps entirely (the sentinel block
    # index is constant, so Pallas does not even re-DMA it).
    @pl.when(blk != sent_blk)
    def _():
        # (a) In-kernel gather of the query rows belonging to this tile:
        #     oh_g[m, r] = (q_idx[m] == i*tq + r).  Pairs owned by other tiles
        #     (and sentinel padding) get all-zero rows and are also masked by
        #     the scatter one-hot below, so every real pair counts once.
        col_ids = i * tq + jax.lax.broadcasted_iota(jnp.int32, (tm, tq), 1)
        oh_g = (qidc_ref[...] == col_ids).astype(compute_dtype)
        nqg = jnp.dot(oh_g, nq_ref[...], preferred_element_type=jnp.float32)

        # (b) In-kernel gather of the tiny normalised pos-enc table.
        k_ids = jax.lax.broadcasted_iota(jnp.int32, (tm, kp), 1)
        oh_k = (kid_ref[...] == k_ids).astype(compute_dtype)
        peg = jnp.dot(oh_k, pe_ref[...], preferred_element_type=jnp.float32)

        # (c) Per-head dot product + broadcast back per channel fused into one
        #     matmul against the block-diagonal PP = pool @ pool^T.
        prod = (nqg * peg).astype(compute_dtype)
        attn_b = jnp.dot(prod, pp_ref[...],
                         preferred_element_type=jnp.float32)      # (tm, HCp)
        weighted = attn_b.astype(compute_dtype) * vg_ref[...]     # cd elementwise

        # (d) Segment-sum scatter into this query tile via a tile-local one-hot.
        row_ids = i * tq + jax.lax.broadcasted_iota(jnp.int32, (tq, tm), 0)
        oh_s = (qidr_ref[...] == row_ids).astype(compute_dtype)   # (tq, tm)
        acc_ref[...] += jnp.dot(oh_s, weighted,
                                preferred_element_type=jnp.float32)

    @pl.when(s == pl.num_programs(1) - 1)
    def _():
        y = jnp.dot(acc_ref[...].astype(compute_dtype), wo_ref[...],
                    preferred_element_type=jnp.float32) + bo_ref[...]
        cp = y.shape[1]
        valid = (i * tq + jax.lax.broadcasted_iota(jnp.int32, (tq, cp), 0)
                 ) < n_valid
        y = jnp.where(valid, y, 0.0)                # mask padded query rows
        y_ref[...] = y.astype(y_ref.dtype)
        # per-tile partial sums for the two-pass BatchNorm that follows.
        psum_ref[...] = jnp.sum(y, axis=0, keepdims=True)[None]
        psq_ref[...] = jnp.sum(y * y, axis=0, keepdims=True)[None]


def _attn_call(sched, nq, vg, pe, pp, wo, bo,
               *, n_valid, hcp, cp, compute_dtype, dim_sem):
    tq, tm = sched["tq"], sched["tm"]
    n_pad = sched["n_pad"]
    m_steps = sched["m_steps"]
    kp = pe.shape[0]
    nqt = n_pad // tq

    def _pair_rows(i, s, tbl):
        return (tbl[i * m_steps + s], 0)

    def _pair_cols(i, s, tbl):
        return (0, tbl[i * m_steps + s])

    def _qtile(i, s, tbl):
        return (i, 0)

    def _qtile3(i, s, tbl):
        return (i, 0, 0)

    def _const(i, s, tbl):
        return (0, 0)

    grid_spec = pltpu.PrefetchScalarGridSpec(
        num_scalar_prefetch=1,
        grid=(nqt, m_steps),
        in_specs=[
            pl.BlockSpec((1, tm), _pair_cols),     # query ids (lane layout)
            pl.BlockSpec((tm, 1), _pair_rows),     # query ids (sublane layout)
            pl.BlockSpec((tm, 1), _pair_rows),     # kernel-offset ids
            pl.BlockSpec((tq, hcp), _qtile),       # resident norm-q tile
            pl.BlockSpec((tm, hcp), _pair_rows),   # gathered values (per key)
            pl.BlockSpec(pe.shape, _const),        # normalised pos-enc table
            pl.BlockSpec(pp.shape, _const),        # block-diagonal pool@pool^T
            pl.BlockSpec(wo.shape, _const),
            pl.BlockSpec(bo.shape, _const),
        ],
        out_specs=(pl.BlockSpec((tq, cp), _qtile),
                   pl.BlockSpec((1, 1, cp), _qtile3),
                   pl.BlockSpec((1, 1, cp), _qtile3)),
        scratch_shapes=[pltpu.VMEM((tq, hcp), jnp.float32)],
    )

    itemsize = jnp.dtype(compute_dtype).itemsize
    flops = int(nqt * m_steps * 2 * tm * hcp * (2 * tq + kp + hcp)
                + nqt * 2 * tq * hcp * cp)
    bytes_accessed = int(
        nqt * m_steps * (tm * hcp * itemsize + 3 * tm * 4)
        + nqt * (tq * hcp * itemsize + tq * cp * itemsize + 2 * cp * 4)
        + (kp * hcp + hcp * hcp + hcp * cp) * itemsize)

    kern = functools.partial(
        attn_kernel, tq=tq, kp=kp, n_valid=n_valid,
        sent_blk=sched["sent_blk"], m_steps=m_steps,
        compute_dtype=compute_dtype)

    return pl.pallas_call(
        kern,
        out_shape=(jax.ShapeDtypeStruct((n_pad, cp), compute_dtype),
                   jax.ShapeDtypeStruct((nqt, 1, cp), jnp.float32),
                   jax.ShapeDtypeStruct((nqt, 1, cp), jnp.float32)),
        grid_spec=grid_spec,
        compiler_params=pltpu.CompilerParams(
            dimension_semantics=dim_sem,
            vmem_limit_bytes=VMEM_LIMIT),
        cost_estimate=pl.CostEstimate(flops=flops, transcendentals=0,
                                      bytes_accessed=bytes_accessed),
    )(sched["blk_tbl"], sched["qid_row"], sched["qid_col"], sched["kid_col"],
      nq, vg, pe, pp, wo, bo)


# -----------------------------------------------------------------------------
# Kernel 3: final epilogue  out = relu(BN2(y2) + residual), tiled over points.
# -----------------------------------------------------------------------------
def final_kernel(y_ref, res_ref, scale_ref, shift_ref, out_ref):
    out_ref[...] = jnp.maximum(
        y_ref[...].astype(jnp.float32) * scale_ref[...] + shift_ref[...]
        + res_ref[...], 0.0)


def _final_call(y, res, scale, shift, *, tq, dim_sem):
    n_pad, cp = res.shape
    return pl.pallas_call(
        final_kernel,
        out_shape=jax.ShapeDtypeStruct((n_pad, cp), jnp.float32),
        grid=(n_pad // tq,),
        in_specs=[pl.BlockSpec((tq, cp), lambda i: (i, 0)),
                  pl.BlockSpec((tq, cp), lambda i: (i, 0)),
                  pl.BlockSpec((1, cp), lambda i: (0, 0)),
                  pl.BlockSpec((1, cp), lambda i: (0, 0))],
        out_specs=pl.BlockSpec((tq, cp), lambda i: (i, 0)),
        compiler_params=pltpu.CompilerParams(
            dimension_semantics=dim_sem,
            vmem_limit_bytes=VMEM_LIMIT),
    )(y, res, scale, shift)


# -----------------------------------------------------------------------------
# Host-side pair schedule (built ONCE per kernel-map and reused by both layers
# and both precision runs): sort pairs by query index, pad to whole pair
# blocks, and build the per-(query-tile, step) block table that the attention
# kernel consumes via scalar prefetch.  m_steps is bucketed to a power of two
# so that different kq_maps of similar density reuse the same compiled kernel.
# -----------------------------------------------------------------------------
def build_pair_schedule(kq_map, kernel_volume, *, tq, tm, n_points):
    kq = np.asarray(jax.device_get(kq_map)).astype(np.int64)
    kern = kq[0] % kernel_volume
    key = kq[0] // kernel_volume
    q = kq[1]
    n_pad = _round_up(max(int(n_points), 1), tq)

    order = np.argsort(q, kind="stable")
    q_s, key_s, kern_s = q[order], key[order], kern[order]
    m = int(q_s.shape[0])

    n_real_blocks = max(1, -(-m // tm))
    m_tot = (n_real_blocks + 1) * tm          # + one all-sentinel block
    sentinel = n_pad                          # never matches any query row

    q_pad = np.full((m_tot,), sentinel, np.int32)
    key_g = np.zeros((m_tot,), np.int32)
    kern_g = np.zeros((m_tot,), np.int32)
    q_pad[:m] = q_s
    key_g[:m] = key_s
    kern_g[:m] = kern_s

    nqt = n_pad // tq
    sent_blk = n_real_blocks
    blocks_per_tile = [[] for _ in range(nqt)]
    for b in range(n_real_blocks):
        qs = q_s[b * tm: min((b + 1) * tm, m)]
        if qs.size == 0:
            continue
        for t in range(int(qs.min()) // tq, int(qs.max()) // tq + 1):
            blocks_per_tile[t].append(b)
    m_steps = max(1, max((len(bl) for bl in blocks_per_tile), default=1))
    m_steps = 1 << (m_steps - 1).bit_length()     # bucket -> fewer recompiles
    blk_tbl = np.full((nqt, m_steps), sent_blk, np.int32)
    for t, bl in enumerate(blocks_per_tile):
        blk_tbl[t, : len(bl)] = bl

    return dict(
        qid_row=jnp.asarray(q_pad[None, :]),        # (1, m_tot)  int32
        qid_col=jnp.asarray(q_pad[:, None]),        # (m_tot, 1)  int32
        kid_col=jnp.asarray(kern_g[:, None]),       # (m_tot, 1)  int32
        key_gather=jnp.asarray(key_g),              # (m_tot,)    int32
        blk_tbl=jnp.asarray(blk_tbl.reshape(-1)),   # (nqt*m_steps,) int32
        m_steps=int(m_steps), m_tot=int(m_tot),
        sent_blk=int(sent_blk), n_pad=int(n_pad),
        tq=int(tq), tm=int(tm),
    )


# -----------------------------------------------------------------------------
# Full FastPointTransformerBasicBlock forward.
# -----------------------------------------------------------------------------
def fpt_block_forward(feat, points, kq_map, params, num_heads, kernel_volume,
                      *, compute_dtype=jnp.bfloat16, tq=256, tm=1024,
                      sched=None, core_parallel=False):
    # TODO(synk): the Minkowski coordinate-manager / kernel-map generation and
    # the SparseTensor wrapper have no Pallas equivalent; kq_map (shared by
    # both layers, as in the block) is taken as a precomputed input.
    f32 = jnp.float32
    N, C = feat.shape
    H = num_heads
    K = kernel_volume
    assert C % H == 0
    Ch = C // H

    if sched is None:
        # Production: build once per kernel-map outside the forward (it does a
        # host round-trip and its shapes are data-dependent).
        sched = build_pair_schedule(kq_map, K, tq=tq, tm=tm, n_points=N)
    tq, tm = sched["tq"], sched["tm"]
    N_pad = sched["n_pad"]

    Cp = _round_up(C, LANE)            # lane-dense "plain" channel axis
    HCp = _round_up(C, LANE)           # lane-dense per-head channel axis
    assert HCp % H == 0
    Chp = HCp // H
    Kp = _round_up(K, 8)

    if core_parallel:                  # v7x: shard point tiles across both TCs
        sem1 = (pltpu.CORE_PARALLEL,)
        sem2 = (pltpu.CORE_PARALLEL, pltpu.ARBITRARY)
    else:
        sem1 = ("parallel",)
        sem2 = ("parallel", "arbitrary")

    # original channel j -> padded per-head-contiguous column
    col_map = (np.arange(C) // Ch) * Chp + (np.arange(C) % Ch)
    head_of = np.arange(HCp) // Chp
    pp_np = (head_of[:, None] == head_of[None, :]).astype(np.float32)
    pp_f32 = jnp.asarray(pp_np, f32)                 # proj: f32 sum-of-squares
    pp_cd = jnp.asarray(pp_np, compute_dtype)        # attention

    def head_cols(w):                                # (r, C) -> (r, HCp)
        out = jnp.zeros((w.shape[0], HCp), f32)
        return out.at[:, col_map].set(w.astype(f32))

    def pad_layer_params(lp):
        wq = _pad2(head_cols(lp["wq"]), Cp, HCp)
        wv = _pad2(head_cols(lp["wv"]), Cp, HCp)
        wqv = jnp.concatenate([wq, wv], axis=1).astype(compute_dtype)
        bqv = jnp.concatenate([head_cols(lp["bq"]), head_cols(lp["bv"])],
                              axis=1)                                  # f32
        wo = jnp.zeros((HCp, Cp), f32).at[col_map, :C].set(
            lp["wo"].astype(f32)).astype(compute_dtype)
        bo = _pad2(lp["bo"], 1, Cp)
        npe = lp["pe"] / jnp.maximum(
            jnp.linalg.norm(lp["pe"], axis=-1, keepdims=True), NORM_EPS)
        npe_p = jnp.zeros((K, H, Chp), f32).at[:, :, :Ch].set(npe)
        npe_p = jnp.zeros((Kp, HCp), f32).at[:K].set(
            npe_p.reshape(K, HCp)).astype(compute_dtype)
        return dict(wqv=wqv, bqv=bqv, wo=wo, bo=bo, npe=npe_p)

    l1 = pad_layer_params(params["layer1"])
    l2 = pad_layer_params(params["layer2"])

    def pad_vec(v, fill):
        if Cp == C:
            return v.astype(f32)
        return jnp.concatenate([v.astype(f32), jnp.full((Cp - C,), fill, f32)])

    g1, b1 = pad_vec(params["bn1_gamma"], 1.0), pad_vec(params["bn1_beta"], 0.0)
    g2, b2 = pad_vec(params["bn2_gamma"], 1.0), pad_vec(params["bn2_beta"], 0.0)

    feat_p = _pad2(feat, N_pad, Cp)
    intra1_p = _pad2(intra_pos_mlp(points, params["layer1"]), N_pad, Cp)
    intra2_p = _pad2(intra_pos_mlp(points, params["layer2"]), N_pad, Cp)

    def run_layer(a, scale, shift, apply_relu, intra_p, lp):
        nq, v = _proj_call(a, intra_p, scale, shift, lp["wqv"], lp["bqv"],
                           pp_f32, tq=tq, apply_relu=apply_relu, hcp=HCp,
                           compute_dtype=compute_dtype, dim_sem=sem1)
        # Key-indexed value gather: keys are arbitrary over all points (not
        # tile-local), so this one stays an O(M*HC) XLA take.  The query and
        # pos-enc gathers are done in-kernel with one-hot matmuls instead.
        vg = jnp.take(v, sched["key_gather"], axis=0)
        y, psum, psq = _attn_call(
            sched, nq, vg, lp["npe"], pp_cd, lp["wo"], lp["bo"],
            n_valid=N, hcp=HCp, cp=Cp, compute_dtype=compute_dtype,
            dim_sem=sem2)
        mean = jnp.sum(psum[:, 0, :], axis=0) / N
        ex2 = jnp.sum(psq[:, 0, :], axis=0) / N
        var = jnp.maximum(ex2 - mean * mean, 0.0)
        return y, mean, var

    def bn_affine(mean, var, gamma, beta):
        inv = gamma * jax.lax.rsqrt(var + BN_EPS)
        return inv.reshape(1, Cp), (beta - mean * inv).reshape(1, Cp)

    ones_c = jnp.ones((1, Cp), f32)
    zeros_c = jnp.zeros((1, Cp), f32)

    # layer1; its BatchNorm+ReLU are fused into the layer-2 projection kernel.
    y1, mean1, var1 = run_layer(feat_p, ones_c, zeros_c, False, intra1_p, l1)
    scale1, shift1 = bn_affine(mean1, var1, g1, b1)

    # layer2; its BatchNorm + residual + ReLU go into the epilogue kernel.
    y2, mean2, var2 = run_layer(y1, scale1, shift1, True, intra2_p, l2)
    scale2, shift2 = bn_affine(mean2, var2, g2, b2)

    out_p = _final_call(y2, feat_p, scale2, shift2, tq=tq, dim_sem=sem1)
    return out_p[:N, :C]


# -----------------------------------------------------------------------------
# Pure-JAX reference (mirrors the PyTorch block, training-mode BatchNorm).
# -----------------------------------------------------------------------------
def reference_block_forward(feat, points, kq_map, params, num_heads,
                            kernel_volume):
    N, C = feat.shape
    H = num_heads
    K = kernel_volume
    Ch = C // H

    kern_idx = kq_map[0] % K
    key_idx = kq_map[0] // K
    q_idx = kq_map[1]

    def bn(x, gamma, beta):
        mu = x.mean(0, keepdims=True)
        var = ((x - mu) ** 2).mean(0, keepdims=True)
        return gamma * (x - mu) / jnp.sqrt(var + BN_EPS) + beta

    def layer(x_in, lp):
        x = x_in + intra_pos_mlp(points, lp)
        q = (x @ lp["wq"] + lp["bq"]).reshape(N, H, Ch)
        v = (x @ lp["wv"] + lp["bv"]).reshape(N, H, Ch)

        def l2n(t):
            n = jnp.linalg.norm(t, axis=-1, keepdims=True)
            return t / jnp.maximum(n, NORM_EPS)

        nq = l2n(q)
        npe = l2n(lp["pe"])
        attn = jnp.sum(nq[q_idx] * npe[kern_idx], axis=-1)         # (M, H)
        out = jnp.zeros((N, H, Ch), jnp.float32).at[q_idx].add(
            attn[:, :, None] * v[key_idx])
        return out.reshape(N, C) @ lp["wo"] + lp["bo"]

    y1 = layer(feat, params["layer1"])
    z1 = jnp.maximum(bn(y1, params["bn1_gamma"], params["bn1_beta"]), 0.0)
    y2 = layer(z1, params["layer2"])
    return jnp.maximum(
        bn(y2, params["bn2_gamma"], params["bn2_beta"]) + feat, 0.0)


# -----------------------------------------------------------------------------
if __name__ == "__main__":
    N = 160                       # sparse voxels / points
    in_channels = 32              # == out_channels (the basic block requires it)
    num_heads = 8                 # FastPointTransformerLayer default
    attn_channels = in_channels // num_heads
    dimension = 3
    kernel_size = 3
    kernel_volume = kernel_size ** dimension     # 27
    M = 1200                      # key/query pairs

    key = jax.random.PRNGKey(0)
    ks = jax.random.split(key, 32)

    feat = jax.random.normal(ks[0], (N, in_channels), jnp.float32)
    points = jax.random.normal(ks[1], (N, dimension), jnp.float32)

    key_idx = jax.random.randint(ks[2], (M,), 0, N)
    q_idx = jax.random.randint(ks[3], (M,), 0, N)
    kern_idx = jax.random.randint(ks[4], (M,), 0, kernel_volume)
    kq_map = jnp.stack([key_idx * kernel_volume + kern_idx,
                        q_idx]).astype(jnp.int32)

    def make_layer_params(kk, s=0.2):
        return {
            "w1": s * jax.random.normal(kk[0], (dimension, dimension), jnp.float32),
            "w2": s * jax.random.normal(kk[1], (dimension, in_channels), jnp.float32),
            "w3": s * jax.random.normal(kk[2], (in_channels, in_channels), jnp.float32),
            "b3": s * jax.random.normal(kk[3], (1, in_channels), jnp.float32),
            "wq": s * jax.random.normal(kk[4], (in_channels, in_channels), jnp.float32),
            "bq": s * jax.random.normal(kk[5], (1, in_channels), jnp.float32),
            "wv": s * jax.random.normal(kk[6], (in_channels, in_channels), jnp.float32),
            "bv": s * jax.random.normal(kk[7], (1, in_channels), jnp.float32),
            "pe": jax.random.normal(kk[8], (kernel_volume, num_heads, attn_channels),
                                    jnp.float32),
            "wo": s * jax.random.normal(kk[9], (in_channels, in_channels), jnp.float32),
            "bo": s * jax.random.normal(kk[10], (1, in_channels), jnp.float32),
        }

    params = {
        "layer1": make_layer_params(ks[5:16]),
        "layer2": make_layer_params(ks[16:27]),
        "bn1_gamma": jnp.ones((in_channels,), jnp.float32),   # default BN init
        "bn1_beta": jnp.zeros((in_channels,), jnp.float32),
        "bn2_gamma": jnp.ones((in_channels,), jnp.float32),
        "bn2_beta": jnp.zeros((in_channels,), jnp.float32),
    }

    ref = jax.block_until_ready(
        reference_block_forward(feat, points, kq_map, params, num_heads,
                                kernel_volume))

    # Pair schedule built ONCE per kernel-map (hoisted out of the forward) and
    # reused by both layers and both precision runs.
    TQ, TM = 256, 1024
    sched = build_pair_schedule(kq_map, kernel_volume, tq=TQ, tm=TM,
                                n_points=N)

    # f32 compute path: strict semantics check.
    out_f32 = jax.block_until_ready(
        fpt_block_forward(feat, points, kq_map, params, num_heads,
                          kernel_volume, compute_dtype=jnp.float32,
                          sched=sched))
    assert out_f32.shape == (N, in_channels)
    err32 = float(jnp.max(jnp.abs(out_f32 - ref)))
    assert jnp.allclose(out_f32, ref, atol=2e-3, rtol=2e-3), (
        f"f32 path max abs err {err32}")

    # bf16 MXU-operand path (the recommended perf configuration on v6e/v7x;
    # pass compute_dtype=jnp.float32 on v5e).  Mixed precision, so only a
    # coarse sanity bound vs the f32 reference.
    out_bf16 = jax.block_until_ready(
        fpt_block_forward(feat, points, kq_map, params, num_heads,
                          kernel_volume, compute_dtype=jnp.bfloat16,
                          sched=sched))
    assert out_bf16.shape == (N, in_channels)
    assert bool(jnp.all(jnp.isfinite(out_bf16)))
    err16_max = float(jnp.max(jnp.abs(out_bf16 - ref)))
    err16_mean = float(jnp.mean(jnp.abs(out_bf16 - ref)))
    assert err16_mean < 0.15 and err16_max < 0.8, (
        f"bf16 path errs mean={err16_mean} max={err16_max}")

    print("KERNEL_OK")
</pallas_src>

<mosaic_0001>
module attributes {stable_mosaic.version = 11 : i64} {
  func.func @proj_kernel(%arg0: i32, %arg1: memref<256x128xf32, #tpu.memory_space<vmem>>, %arg2: memref<256x128xf32, #tpu.memory_space<vmem>>, %arg3: memref<1x128xf32, #tpu.memory_space<vmem>>, %arg4: memref<1x128xf32, #tpu.memory_space<vmem>>, %arg5: memref<128x256xf32, #tpu.memory_space<vmem>>, %arg6: memref<1x256xf32, #tpu.memory_space<vmem>>, %arg7: memref<128x128xf32, #tpu.memory_space<vmem>>, %arg8: memref<256x128xf32, #tpu.memory_space<vmem>>, %arg9: memref<256x128xf32, #tpu.memory_space<vmem>>) attributes {dimension_semantics = [#tpu.dimension_semantics<parallel>], iteration_bounds = array<i64: 1>, scalar_prefetch = 0 : i64, scratch_operands = 0 : i64, tpu.core_type = #tpu.core_type<tc>, window_params = [{transform_indices = @transform_0, window_bounds = array<i64: 256, 128>}, {transform_indices = @transform_1, window_bounds = array<i64: 256, 128>}, {pipeline_mode = #tpu.pipeline_mode<synchronous>, transform_indices = @transform_2, window_bounds = array<i64: 1, 128>}, {pipeline_mode = #tpu.pipeline_mode<synchronous>, transform_indices = @transform_3, window_bounds = array<i64: 1, 128>}, {pipeline_mode = #tpu.pipeline_mode<synchronous>, transform_indices = @transform_4, window_bounds = array<i64: 128, 256>}, {pipeline_mode = #tpu.pipeline_mode<synchronous>, transform_indices = @transform_5, window_bounds = array<i64: 1, 256>}, {pipeline_mode = #tpu.pipeline_mode<synchronous>, transform_indices = @transform_6, window_bounds = array<i64: 128, 128>}, {transform_indices = @transform_7, window_bounds = array<i64: 256, 128>}, {transform_indices = @transform_8, window_bounds = array<i64: 256, 128>}]} {
    %c0 = arith.constant 0 : index
    %c0_0 = arith.constant 0 : index
    %0 = vector.load %arg1[%c0, %c0_0] : memref<256x128xf32, #tpu.memory_space<vmem>>, vector<256x128xf32>
    %c0_1 = arith.constant 0 : index
    %c0_2 = arith.constant 0 : index
    %1 = vector.load %arg3[%c0_1, %c0_2] : memref<1x128xf32, #tpu.memory_space<vmem>>, vector<1x128xf32>
    %2 = vector.broadcast %1 : vector<1x128xf32> to vector<256x128xf32>
    %3 = arith.mulf %0, %2 : vector<256x128xf32>
    %c0_3 = arith.constant 0 : index
    %c0_4 = arith.constant 0 : index
    %4 = vector.load %arg4[%c0_3, %c0_4] : memref<1x128xf32, #tpu.memory_space<vmem>>, vector<1x128xf32>
    %5 = vector.broadcast %4 : vector<1x128xf32> to vector<256x128xf32>
    %6 = arith.addf %3, %5 : vector<256x128xf32>
    %c0_5 = arith.constant 0 : index
    %c0_6 = arith.constant 0 : index
    %7 = vector.load %arg2[%c0_5, %c0_6] : memref<256x128xf32, #tpu.memory_space<vmem>>, vector<256x128xf32>
    %8 = arith.addf %6, %7 : vector<256x128xf32>
    %c0_7 = arith.constant 0 : index
    %c0_8 = arith.constant 0 : index
    %9 = vector.load %arg5[%c0_7, %c0_8] : memref<128x256xf32, #tpu.memory_space<vmem>>, vector<128x256xf32>
    %cst = arith.constant dense<0.000000e+00> : vector<256x256xf32>
    %10 = tpu.matmul %8, %9, %cst {dimension_numbers = #tpu.dot_dimension_numbers<[1], [0], [0], [1], [0, 0, 1, 1], [], []>} : vector<256x128xf32>, vector<128x256xf32>, vector<256x256xf32> -> vector<256x256xf32>
    %c0_9 = arith.constant 0 : index
    %c0_10 = arith.constant 0 : index
    %11 = vector.load %arg6[%c0_9, %c0_10] : memref<1x256xf32, #tpu.memory_space<vmem>>, vector<1x256xf32>
    %12 = vector.broadcast %11 : vector<1x256xf32> to vector<256x256xf32>
    %13 = arith.addf %10, %12 : vector<256x256xf32>
    %14 = vector.extract_strided_slice %13 {offsets = [0, 0], sizes = [256, 128], strides = [1, 1]} : vector<256x256xf32> to vector<256x128xf32>
    %15 = vector.extract_strided_slice %13 {offsets = [0, 128], sizes = [256, 128], strides = [1, 1]} : vector<256x256xf32> to vector<256x128xf32>
    %16 = arith.mulf %14, %14 : vector<256x128xf32>
    %c0_11 = arith.constant 0 : index
    %c0_12 = arith.constant 0 : index
    %17 = vector.load %arg7[%c0_11, %c0_12] : memref<128x128xf32, #tpu.memory_space<vmem>>, vector<128x128xf32>
    %cst_13 = arith.constant dense<0.000000e+00> : vector<256x128xf32>
    %18 = tpu.matmul %16, %17, %cst_13 {dimension_numbers = #tpu.dot_dimension_numbers<[1], [0], [0], [1], [0, 0, 1, 1], [], []>} : vector<256x128xf32>, vector<128x128xf32>, vector<256x128xf32> -> vector<256x128xf32>
    %cst_14 = arith.constant 1.000000e-24 : f32
    %19 = vector.broadcast %cst_14 : f32 to vector<256x128xf32>
    %20 = arith.maximumf %18, %19 : vector<256x128xf32>
    %21 = math.rsqrt %20 : vector<256x128xf32>
    %22 = arith.mulf %14, %21 : vector<256x128xf32>
    %c0_15 = arith.constant 0 : index
    %c0_16 = arith.constant 0 : index
    %23 = vector.load %arg8[%c0_15, %c0_16] : memref<256x128xf32, #tpu.memory_space<vmem>>, vector<256x128xf32>
    tpu.vector_store %arg8[%c0_15, %c0_16], %22 {strides = array<i32>} : memref<256x128xf32, #tpu.memory_space<vmem>>, vector<256x128xf32>,
    %c0_17 = arith.constant 0 : index
    %c0_18 = arith.constant 0 : index
    %24 = vector.load %arg9[%c0_17, %c0_18] : memref<256x128xf32, #tpu.memory_space<vmem>>, vector<256x128xf32>
    tpu.vector_store %arg9[%c0_17, %c0_18], %15 {strides = array<i32>} : memref<256x128xf32, #tpu.memory_space<vmem>>, vector<256x128xf32>,
    return
  }
  func.func @transform_0(%arg0: i32) -> (i32, i32) {
    %c0_i32 = arith.constant 0 : i32
    %c0_i32_0 = arith.constant 0 : i32
    return %arg0, %c0_i32 : i32, i32
  }
  func.func @transform_1(%arg0: i32) -> (i32, i32) {
    %c0_i32 = arith.constant 0 : i32
    %c0_i32_0 = arith.constant 0 : i32
    return %arg0, %c0_i32 : i32, i32
  }
  func.func @transform_2(%arg0: i32) -> (i32, i32) {
    %c0_i32 = arith.constant 0 : i32
    %c0_i32_0 = arith.constant 0 : i32
    %c0_i32_1 = arith.constant 0 : i32
    return %c0_i32, %c0_i32_0 : i32, i32
  }
  func.func @transform_3(%arg0: i32) -> (i32, i32) {
    %c0_i32 = arith.constant 0 : i32
    %c0_i32_0 = arith.constant 0 : i32
    %c0_i32_1 = arith.constant 0 : i32
    return %c0_i32, %c0_i32_0 : i32, i32
  }
  func.func @transform_4(%arg0: i32) -> (i32, i32) {
    %c0_i32 = arith.constant 0 : i32
    %c0_i32_0 = arith.constant 0 : i32
    %c0_i32_1 = arith.constant 0 : i32
    return %c0_i32, %c0_i32_0 : i32, i32
  }
  func.func @transform_5(%arg0: i32) -> (i32, i32) {
    %c0_i32 = arith.constant 0 : i32
    %c0_i32_0 = arith.constant 0 : i32
    %c0_i32_1 = arith.constant 0 : i32
    return %c0_i32, %c0_i32_0 : i32, i32
  }
  func.func @transform_6(%arg0: i32) -> (i32, i32) {
    %c0_i32 = arith.constant 0 : i32
    %c0_i32_0 = arith.constant 0 : i32
    %c0_i32_1 = arith.constant 0 : i32
    return %c0_i32, %c0_i32_0 : i32, i32
  }
  func.func @transform_7(%arg0: i32) -> (i32, i32) {
    %c0_i32 = arith.constant 0 : i32
    %c0_i32_0 = arith.constant 0 : i32
    return %arg0, %c0_i32 : i32, i32
  }
  func.func @transform_8(%arg0: i32) -> (i32, i32) {
    %c0_i32 = arith.constant 0 : i32
    %c0_i32_0 = arith.constant 0 : i32
    return %arg0, %c0_i32 : i32, i32
  }
}

</mosaic_0001>

<llo_original>
// kernel: tpu_custom_call.1
$region0: #{tpu_custom_call.1}
  #allocation0 [shape = 'u32[]', space=smem, size = 0x4, offset = 0x4, fixed_abs, tag = 'smem constant byte address 0x4 - core index']
  #allocation1 [shape = 'u32[72,128]{1,0:T(1,128)}', space=vmem, size = 0x9000, scoped, tag = 'internal scratch']
  %s0 = inlined_call_operand.hbm [shape: f32[256,128], index: 0, kind: input, shape index: {}]
  %s1 = inlined_call_operand.hbm [shape: f32[256,128], index: 1, kind: input, shape index: {}]
  %s2 = inlined_call_operand.vmem [shape: f32[1,128], index: 2, kind: input, shape index: {}]
  %s3 = inlined_call_operand.hbm [shape: f32[1,128], index: 3, kind: input, shape index: {}]
  %s4 = inlined_call_operand.hbm [shape: f32[128,256], index: 4, kind: input, shape index: {}]
  %s5 = inlined_call_operand.vmem [shape: f32[1,256], index: 5, kind: input, shape index: {}]
  %s6 = inlined_call_operand.hbm [shape: f32[128,128], index: 6, kind: input, shape index: {}]
  %s7 = inlined_call_operand.hbm [shape: f32[256,128], index: 7, kind: output, shape index: {0}]
  %s8 = inlined_call_operand.hbm [shape: f32[256,128], index: 8, kind: output, shape index: {1}]
  %9 = xla_tuple %s7, %s8
  %s10 = sld [smem:[#allocation0]]
  $region66: #{tpu_custom_call.1} parent=0
    _
  %s12 = ssub.s32 1, %s10
  %s13 = scalar_select 0, %s12, %s10
  $region1: #{tpu_custom_call.1} parent=0
    #allocation2 [shape = 'u8[131072]{0}', space=vmem, size = 0x20000, scoped, tag = 'input window, operand 0, single buffered']
    #allocation3 [shape = 's32[1]{0}', space=sflag, size = 0x4, scoped, tag = 'scoped memory for tpu_custom_call.1']
    #allocation4 [shape = 's32[1]{0}', space=sflag, size = 0x4, scoped, tag = 'scoped memory for tpu_custom_call.1']
    #allocation5 [shape = 'u8[131072]{0}', space=vmem, size = 0x20000, scoped, tag = 'input window, operand 1, single buffered']
    #allocation6 [shape = 's32[1]{0}', space=sflag, size = 0x4, scoped, tag = 'scoped memory for tpu_custom_call.1']
    #allocation7 [shape = 'u8[512]{0}', space=vmem, size = 0x400, scoped, tag = 'input window, operand 3, single buffered']
    #allocation8 [shape = 'u8[131072]{0}', space=vmem, size = 0x20000, scoped, tag = 'input window, operand 4, single buffered']
    #allocation9 [shape = 's32[1]{0}', space=sflag, size = 0x4, scoped, tag = 'scoped memory for tpu_custom_call.1']
    #allocation10 [shape = 'u8[65536]{0}', space=vmem, size = 0x10000, scoped, tag = 'input window, operand 6, single buffered']
    #allocation11 [shape = 'u8[131072]{0}', space=vmem, size = 0x20000, scoped, tag = 'output window, operand 0, single buffered']
    #allocation12 [shape = 'u8[131072]{0}', space=vmem, size = 0x20000, scoped, tag = 'output window, operand 1, single buffered']
    #allocation13 [shape = 's32[1]{0}', space=sflag, size = 0x4, scoped, tag = 'scoped memory for tpu_custom_call.1']
    %14 = vsyncpa [#allocation3], 0
    %15 = vsyncpa [#allocation6], 0
    %16 = vsyncpa [#allocation9], 0
    %17 = vsyncpa [#allocation4], 0
    %18 = vsyncpa [#allocation13], 0
    // Predicated region
    $region2: #{tpu_custom_call.1} parent=1 // pred_check
      _
    $region3: #{tpu_custom_call.1} parent=1 // pred_check_branch
      %20 = sbr.rel (0) target = $region5
    $region4: #{tpu_custom_call.1} parent=1 // pred_region
      %22 = vsyncadd [#allocation3], 0
      %s23 = sshll.u32 %s0, 4
      %s24 = int_to_ptr.hbm [resolvable:$true] %s23
      %s25 = sshll.u32 [#allocation2], 4
      %s26 = int_to_ptr.vmem [resolvable:$true] %s25
      %31 = dma.hbm_to_vmem [thread:$0]  %s24, 4096, %s26, [#allocation3], 128, 128, 8
    $region5: #{tpu_custom_call.1} parent=1 // pred_fallthru
      _
    // Predicated region
    $region6: #{tpu_custom_call.1} parent=1 // pred_check
      _
    $region7: #{tpu_custom_call.1} parent=1 // pred_check_branch
      %33 = sbr.rel (0) target = $region9
    $region8: #{tpu_custom_call.1} parent=1 // pred_region
      %35 = vsyncadd [#allocation6], 0
      %s36 = sshll.u32 %s1, 4
      %s37 = int_to_ptr.hbm [resolvable:$true] %s36
      %s38 = sshll.u32 [#allocation5], 4
      %s39 = int_to_ptr.vmem [resolvable:$true] %s38
      %44 = dma.hbm_to_vmem [thread:$0]  %s37, 4096, %s39, [#allocation6], 128, 128, 8
    $region9: #{tpu_custom_call.1} parent=1 // pred_fallthru
      _
    // Predicated region
    $region10: #{tpu_custom_call.1} parent=1 // pred_check
      _
    $region11: #{tpu_custom_call.1} parent=1 // pred_check_branch
      %46 = sbr.rel (0) target = $region13
    $region12: #{tpu_custom_call.1} parent=1 // pred_region
      _
    $region13: #{tpu_custom_call.1} parent=1 // pred_fallthru
      _
    // Predicated region
    $region14: #{tpu_custom_call.1} parent=1 // pred_check
      _
    $region15: #{tpu_custom_call.1} parent=1 // pred_check_branch
      %48 = sbr.rel (0) target = $region17
    $region16: #{tpu_custom_call.1} parent=1 // pred_region
      %50 = vsyncadd [#allocation6], 0
      %s52 = sshll.u32 %s3, 4
      %s53 = int_to_ptr.hbm [resolvable:$true] %s52
      %s54 = sshll.u32 [#allocation7], 4
      %s55 = int_to_ptr.vmem [resolvable:$true] %s54
      %57 = dma.hbm_to_vmem [thread:$0]  %s53, 16, %s55, [#allocation6]
    $region17: #{tpu_custom_call.1} parent=1 // pred_fallthru
      _
    // Predicated region
    $region18: #{tpu_custom_call.1} parent=1 // pred_check
      _
    $region19: #{tpu_custom_call.1} parent=1 // pred_check_branch
      %59 = sbr.rel (0) target = $region21
    $region20: #{tpu_custom_call.1} parent=1 // pred_region
      %61 = vsyncadd [#allocation9], 0
      %s62 = sshll.u32 %s4, 4
      %s63 = int_to_ptr.hbm [resolvable:$true] %s62
      %s64 = sshll.u32 [#allocation8], 4
      %s65 = int_to_ptr.vmem [resolvable:$true] %s64
      %70 = dma.hbm_to_vmem [thread:$0]  %s63, 4096, %s65, [#allocation9], 256, 256, 16
    $region21: #{tpu_custom_call.1} parent=1 // pred_fallthru
      _
    // Predicated region
    $region22: #{tpu_custom_call.1} parent=1 // pred_check
      _
    $region23: #{tpu_custom_call.1} parent=1 // pred_check_branch
      %72 = sbr.rel (0) target = $region25
    $region24: #{tpu_custom_call.1} parent=1 // pred_region
      _
    $region25: #{tpu_custom_call.1} parent=1 // pred_fallthru
      _
    // Predicated region
    $region26: #{tpu_custom_call.1} parent=1 // pred_check
      _
    $region27: #{tpu_custom_call.1} parent=1 // pred_check_branch
      %74 = sbr.rel (0) target = $region29
    $region28: #{tpu_custom_call.1} parent=1 // pred_region
      %76 = vsyncadd [#allocation9], 0
      %s77 = sshll.u32 %s6, 4
      %s78 = int_to_ptr.hbm [resolvable:$true] %s77
      %s79 = sshll.u32 [#allocation10], 4
      %s80 = int_to_ptr.vmem [resolvable:$true] %s79
      %85 = dma.hbm_to_vmem [thread:$0]  %s78, 2048, %s80, [#allocation9], 128, 128, 8
    $region29: #{tpu_custom_call.1} parent=1 // pred_fallthru
      _
    // Predicated region
    $region30: #{tpu_custom_call.1} parent=1 // pred_check
      _
    $region31: #{tpu_custom_call.1} parent=1 // pred_check_branch
      %87 = sbr.rel (0) target = $region33
    $region32: #{tpu_custom_call.1} parent=1 // pred_region
      %89 = dma.done [#allocation3], 4096
    $region33: #{tpu_custom_call.1} parent=1 // pred_fallthru
      _
    // Predicated region
    $region34: #{tpu_custom_call.1} parent=1 // pred_check
      _
    $region35: #{tpu_custom_call.1} parent=1 // pred_check_branch
      %91 = sbr.rel (0) target = $region37
    $region36: #{tpu_custom_call.1} parent=1 // pred_region
      %93 = dma.done [#allocation6], 4096
    $region37: #{tpu_custom_call.1} parent=1 // pred_fallthru
      _
    // Predicated region
    $region38: #{tpu_custom_call.1} parent=1 // pred_check
      _
    $region39: #{tpu_custom_call.1} parent=1 // pred_check_branch
      %95 = sbr.rel (0) target = $region41
    $region40: #{tpu_custom_call.1} parent=1 // pred_region
      %97 = dma.done [#allocation6], 16
    $region41: #{tpu_custom_call.1} parent=1 // pred_fallthru
      _
    // Predicated region
    $region42: #{tpu_custom_call.1} parent=1 // pred_check
      _
    $region43: #{tpu_custom_call.1} parent=1 // pred_check_branch
      %99 = sbr.rel (0) target = $region45
    $region44: #{tpu_custom_call.1} parent=1 // pred_region
      %101 = dma.done [#allocation9], 4096
    $region45: #{tpu_custom_call.1} parent=1 // pred_fallthru
      _
    // Predicated region
    $region46: #{tpu_custom_call.1} parent=1 // pred_check
      _
    $region47: #{tpu_custom_call.1} parent=1 // pred_check_branch
      %103 = sbr.rel (0) target = $region49
    $region48: #{tpu_custom_call.1} parent=1 // pred_region
      %105 = dma.done [#allocation9], 2048
    $region49: #{tpu_custom_call.1} parent=1 // pred_fallthru
      _
    %v106 = vld [vmem:[#allocation2] sm:$0xff]
    %v107 = vld [vmem:[#allocation2 + $0x8] sm:$0xff]
    %v108 = vld [vmem:[#allocation2 + $0x10] sm:$0xff]
    %v109 = vld [vmem:[#allocation2 + $0x18] sm:$0xff]
    %v110 = vld [vmem:[#allocation2 + $0x20] sm:$0xff]
    %v111 = vld [vmem:[#allocation2 + $0x28] sm:$0xff]
    %v112 = vld [vmem:[#allocation2 + $0x30] sm:$0xff]
    %v113 = vld [vmem:[#allocation2 + $0x38] sm:$0xff]
    %v114 = vld [vmem:[#allocation2 + $0x40] sm:$0xff]
    %v115 = vld [vmem:[#allocation2 + $0x48] sm:$0xff]
    %v116 = vld [vmem:[#allocation2 + $0x50] sm:$0xff]
    %v117 = vld [vmem:[#allocation2 + $0x58] sm:$0xff]
    %v118 = vld [vmem:[#allocation2 + $0x60] sm:$0xff]
    %v119 = vld [vmem:[#allocation2 + $0x68] sm:$0xff]
    %v120 = vld [vmem:[#allocation2 + $0x70] sm:$0xff]
    %v121 = vld [vmem:[#allocation2 + $0x78] sm:$0xff]
    %v122 = vld [vmem:[#allocation2 + $0x80] sm:$0xff]
    %v123 = vld [vmem:[#allocation2 + $0x88] sm:$0xff]
    %v124 = vld [vmem:[#allocation2 + $0x90] sm:$0xff]
    %v125 = vld [vmem:[#allocation2 + $0x98] sm:$0xff]
    %v126 = vld [vmem:[#allocation2 + $0xa0] sm:$0xff]
    %v127 = vld [vmem:[#allocation2 + $0xa8] sm:$0xff]
    %v128 = vld [vmem:[#allocation2 + $0xb0] sm:$0xff]
    %v129 = vld [vmem:[#allocation2 + $0xb8] sm:$0xff]
    %v130 = vld [vmem:[#allocation2 + $0xc0] sm:$0xff]
    %v131 = vld [vmem:[#allocation2 + $0xc8] sm:$0xff]
    %v132 = vld [vmem:[#allocation2 + $0xd0] sm:$0xff]
    %v133 = vld [vmem:[#allocation2 + $0xd8] sm:$0xff]
    %v134 = vld [vmem:[#allocation2 + $0xe0] sm:$0xff]
    %v135 = vld [vmem:[#allocation2 + $0xe8] sm:$0xff]
    %v136 = vld [vmem:[#allocation2 + $0xf0] sm:$0xff]
    %v137 = vld [vmem:[#allocation2 + $0xf8] sm:$0xff]
    %v138 = vld [vmem:[%s2] sm:$0x1]
    %v140 = vperm.slane %v138, 0
    %v142 = vmul.f32 %v106, %v140
    %v143 = vmul.f32 %v107, %v140
    %v144 = vmul.f32 %v108, %v140
    %v145 = vmul.f32 %v109, %v140
    %v146 = vmul.f32 %v110, %v140
    %v147 = vmul.f32 %v111, %v140
    %v148 = vmul.f32 %v112, %v140
    %v149 = vmul.f32 %v113, %v140
    %v150 = vmul.f32 %v114, %v140
    %v151 = vmul.f32 %v115, %v140
    %v152 = vmul.f32 %v116, %v140
    %v153 = vmul.f32 %v117, %v140
    %v154 = vmul.f32 %v118, %v140
    %v155 = vmul.f32 %v119, %v140
    %v156 = vmul.f32 %v120, %v140
    %v157 = vmul.f32 %v121, %v140
    %v158 = vmul.f32 %v122, %v140
    %v159 = vmul.f32 %v123, %v140
    %v160 = vmul.f32 %v124, %v140
    %v161 = vmul.f32 %v125, %v140
    %v162 = vmul.f32 %v126, %v140
    %v163 = vmul.f32 %v127, %v140
    %v164 = vmul.f32 %v128, %v140
    %v165 = vmul.f32 %v129, %v140
    %v166 = vmul.f32 %v130, %v140
    %v167 = vmul.f32 %v131, %v140
    %v168 = vmul.f32 %v132, %v140
    %v169 = vmul.f32 %v133, %v140
    %v170 = vmul.f32 %v134, %v140
    %v171 = vmul.f32 %v135, %v140
    %v172 = vmul.f32 %v136, %v140
    %v173 = vmul.f32 %v137, %v140
    %v174 = vld [vmem:[#allocation7] sm:$0x1]
    %v176 = vperm.slane %v174, 0
    %v178 = vadd.f32 %v142, %v176
    %v179 = vadd.f32 %v143, %v176
    %v180 = vadd.f32 %v144, %v176
    %v181 = vadd.f32 %v145, %v176
    %v182 = vadd.f32 %v146, %v176
    %v183 = vadd.f32 %v147, %v176
    %v184 = vadd.f32 %v148, %v176
    %v185 = vadd.f32 %v149, %v176
    %v186 = vadd.f32 %v150, %v176
    %v187 = vadd.f32 %v151, %v176
    %v188 = vadd.f32 %v152, %v176
    %v189 = vadd.f32 %v153, %v176
    %v190 = vadd.f32 %v154, %v176
    %v191 = vadd.f32 %v155, %v176
    %v192 = vadd.f32 %v156, %v176
    %v193 = vadd.f32 %v157, %v176
    %v194 = vadd.f32 %v158, %v176
    %v195 = vadd.f32 %v159, %v176
    %v196 = vadd.f32 %v160, %v176
    %v197 = vadd.f32 %v161, %v176
    %v198 = vadd.f32 %v162, %v176
    %v199 = vadd.f32 %v163, %v176
    %v200 = vadd.f32 %v164, %v176
    %v201 = vadd.f32 %v165, %v176
    %v202 = vadd.f32 %v166, %v176
    %v203 = vadd.f32 %v167, %v176
    %v204 = vadd.f32 %v168, %v176
    %v205 = vadd.f32 %v169, %v176
    %v206 = vadd.f32 %v170, %v176
    %v207 = vadd.f32 %v171, %v176
    %v208 = vadd.f32 %v172, %v176
    %v209 = vadd.f32 %v173, %v176
    %v210 = vld [vmem:[#allocation5] sm:$0xff]
    %v211 = vld [vmem:[#allocation5 + $0x8] sm:$0xff]
    %v212 = vld [vmem:[#allocation5 + $0x10] sm:$0xff]
    %v213 = vld [vmem:[#allocation5 + $0x18] sm:$0xff]
    %v214 = vld [vmem:[#allocation5 + $0x20] sm:$0xff]
    %v215 = vld [vmem:[#allocation5 + $0x28] sm:$0xff]
    %v216 = vld [vmem:[#allocation5 + $0x30] sm:$0xff]
    %v217 = vld [vmem:[#allocation5 + $0x38] sm:$0xff]
    %v218 = vld [vmem:[#allocation5 + $0x40] sm:$0xff]
    %v219 = vld [vmem:[#allocation5 + $0x48] sm:$0xff]
    %v220 = vld [vmem:[#allocation5 + $0x50] sm:$0xff]
    %v221 = vld [vmem:[#allocation5 + $0x58] sm:$0xff]
    %v222 = vld [vmem:[#allocation5 + $0x60] sm:$0xff]
    %v223 = vld [vmem:[#allocation5 + $0x68] sm:$0xff]
    %v224 = vld [vmem:[#allocation5 + $0x70] sm:$0xff]
    %v225 = vld [vmem:[#allocation5 + $0x78] sm:$0xff]
    %v226 = vld [vmem:[#allocation5 + $0x80] sm:$0xff]
    %v227 = vld [vmem:[#allocation5 + $0x88] sm:$0xff]
    %v228 = vld [vmem:[#allocation5 + $0x90] sm:$0xff]
    %v229 = vld [vmem:[#allocation5 + $0x98] sm:$0xff]
    %v230 = vld [vmem:[#allocation5 + $0xa0] sm:$0xff]
    %v231 = vld [vmem:[#allocation5 + $0xa8] sm:$0xff]
    %v232 = vld [vmem:[#allocation5 + $0xb0] sm:$0xff]
    %v233 = vld [vmem:[#allocation5 + $0xb8] sm:$0xff]
    %v234 = vld [vmem:[#allocation5 + $0xc0] sm:$0xff]
    %v235 = vld [vmem:[#allocation5 + $0xc8] sm:$0xff]
    %v236 = vld [vmem:[#allocation5 + $0xd0] sm:$0xff]
    %v237 = vld [vmem:[#allocation5 + $0xd8] sm:$0xff]
    %v238 = vld [vmem:[#allocation5 + $0xe0] sm:$0xff]
    %v239 = vld [vmem:[#allocation5 + $0xe8] sm:$0xff]
    %v240 = vld [vmem:[#allocation5 + $0xf0] sm:$0xff]
    %v241 = vld [vmem:[#allocation5 + $0xf8] sm:$0xff]
    %v242 = vadd.f32 %v178, %v210
    %v243 = vadd.f32 %v179, %v211
    %v244 = vadd.f32 %v180, %v212
    %v245 = vadd.f32 %v181, %v213
    %v246 = vadd.f32 %v182, %v214
    %v247 = vadd.f32 %v183, %v215
    %v248 = vadd.f32 %v184, %v216
    %v249 = vadd.f32 %v185, %v217
    %v250 = vadd.f32 %v186, %v218
    %v251 = vadd.f32 %v187, %v219
    %v252 = vadd.f32 %v188, %v220
    %v253 = vadd.f32 %v189, %v221
    %v254 = vadd.f32 %v190, %v222
    %v255 = vadd.f32 %v191, %v223
    %v256 = vadd.f32 %v192, %v224
    %v257 = vadd.f32 %v193, %v225
    %v258 = vadd.f32 %v194, %v226
    %v259 = vadd.f32 %v195, %v227
    %v260 = vadd.f32 %v196, %v228
    %v261 = vadd.f32 %v197, %v229
    %v262 = vadd.f32 %v198, %v230
    %v263 = vadd.f32 %v199, %v231
    %v264 = vadd.f32 %v200, %v232
    %v265 = vadd.f32 %v201, %v233
    %v266 = vadd.f32 %v202, %v234
    %v267 = vadd.f32 %v203, %v235
    %v268 = vadd.f32 %v204, %v236
    %v269 = vadd.f32 %v205, %v237
    %v270 = vadd.f32 %v206, %v238
    %v271 = vadd.f32 %v207, %v239
    %v272 = vadd.f32 %v208, %v240
    %v273 = vadd.f32 %v209, %v241
    %v274 = vld [vmem:[#allocation8] sm:$0xff]
    %v275 = vld [vmem:[#allocation8 + $0x8] sm:$0xff]
    %v276 = vld [vmem:[#allocation8 + $0x10] sm:$0xff]
    %v277 = vld [vmem:[#allocation8 + $0x18] sm:$0xff]
    %v278 = vld [vmem:[#allocation8 + $0x20] sm:$0xff]
    %v279 = vld [vmem:[#allocation8 + $0x28] sm:$0xff]
    %v280 = vld [vmem:[#allocation8 + $0x30] sm:$0xff]
    %v281 = vld [vmem:[#allocation8 + $0x38] sm:$0xff]
    %v282 = vld [vmem:[#allocation8 + $0x40] sm:$0xff]
    %v283 = vld [vmem:[#allocation8 + $0x48] sm:$0xff]
    %v284 = vld [vmem:[#allocation8 + $0x50] sm:$0xff]
    %v285 = vld [vmem:[#allocation8 + $0x58] sm:$0xff]
    %v286 = vld [vmem:[#allocation8 + $0x60] sm:$0xff]
    %v287 = vld [vmem:[#allocation8 + $0x68] sm:$0xff]
    %v288 = vld [vmem:[#allocation8 + $0x70] sm:$0xff]
    %v289 = vld [vmem:[#allocation8 + $0x78] sm:$0xff]
    %v290 = vld [vmem:[#allocation8 + $0x80] sm:$0xff]
    %v291 = vld [vmem:[#allocation8 + $0x88] sm:$0xff]
    %v292 = vld [vmem:[#allocation8 + $0x90] sm:$0xff]
    %v293 = vld [vmem:[#allocation8 + $0x98] sm:$0xff]
    %v294 = vld [vmem:[#allocation8 + $0xa0] sm:$0xff]
    %v295 = vld [vmem:[#allocation8 + $0xa8] sm:$0xff]
    %v296 = vld [vmem:[#allocation8 + $0xb0] sm:$0xff]
    %v297 = vld [vmem:[#allocation8 + $0xb8] sm:$0xff]
    %v298 = vld [vmem:[#allocation8 + $0xc0] sm:$0xff]
    %v299 = vld [vmem:[#allocation8 + $0xc8] sm:$0xff]
    %v300 = vld [vmem:[#allocation8 + $0xd0] sm:$0xff]
    %v301 = vld [vmem:[#allocation8 + $0xd8] sm:$0xff]
    %v302 = vld [vmem:[#allocation8 + $0xe0] sm:$0xff]
    %v303 = vld [vmem:[#allocation8 + $0xe8] sm:$0xff]
    %v304 = vld [vmem:[#allocation8 + $0xf0] sm:$0xff]
    %v305 = vld [vmem:[#allocation8 + $0xf8] sm:$0xff]
    %v306 = vld [vmem:[%s5] sm:$0x3]
    %v308 = vperm.slane %v306, 0
    %v309 = vperm.slane %v306, 1
    %312 = vmatpush.msra.mxu0 %v304
    %313 = vmatpush.msra.mxu0 %v302
    %314 = vmatpush.msra.mxu0 %v300
    %315 = vmatpush.msra.mxu0 %v298
    %316 = vmatpush.msra.mxu0 %v296
    %317 = vmatpush.msra.mxu0 %v294
    %318 = vmatpush.msra.mxu0 %v292
    %319 = vmatpush.msra.mxu0 %v290
    %320 = vmatpush.msra.mxu0 %v288
    %321 = vmatpush.msra.mxu0 %v286
    %322 = vmatpush.msra.mxu0 %v284
    %323 = vmatpush.msra.mxu0 %v282
    %324 = vmatpush.msra.mxu0 %v280
    %325 = vmatpush.msra.mxu0 %v278
    %326 = vmatpush.msra.mxu0 %v276
    %327 = vmatpush.msra.mxu0 %v274
    %328 = vmatmul.f32.gmra.mxu0 %v242
    %v329 = vpop.f32.mrf.mxu0
    %v330 = vadd.f32 %v308, %v329
    %331 = vmatmul.f32.gmra.mxu0 %v243
    %v332 = vpop.f32.mrf.mxu0
    %v333 = vadd.f32 %v308, %v332
    %334 = vmatmul.f32.gmra.mxu0 %v244
    %v335 = vpop.f32.mrf.mxu0
    %v336 = vadd.f32 %v308, %v335
    %337 = vmatmul.f32.gmra.mxu0 %v245
    %v338 = vpop.f32.mrf.mxu0
    %v339 = vadd.f32 %v308, %v338
    %340 = vmatmul.f32.gmra.mxu0 %v246
    %v341 = vpop.f32.mrf.mxu0
    %v342 = vadd.f32 %v308, %v341
    %343 = vmatmul.f32.gmra.mxu0 %v247
    %v344 = vpop.f32.mrf.mxu0
    %v345 = vadd.f32 %v308, %v344
    %346 = vmatmul.f32.gmra.mxu0 %v248
    %v347 = vpop.f32.mrf.mxu0
    %v348 = vadd.f32 %v308, %v347
    %349 = vmatmul.f32.gmra.mxu0 %v249
    %v350 = vpop.f32.mrf.mxu0
    %v351 = vadd.f32 %v308, %v350
    %352 = vmatmul.f32.gmra.mxu0 %v250
    %v353 = vpop.f32.mrf.mxu0
    %v354 = vadd.f32 %v308, %v353
    %355 = vmatmul.f32.gmra.mxu0 %v251
    %v356 = vpop.f32.mrf.mxu0
    %v357 = vadd.f32 %v308, %v356
    %358 = vmatmul.f32.gmra.mxu0 %v252
    %v359 = vpop.f32.mrf.mxu0
    %v360 = vadd.f32 %v308, %v359
    %361 = vmatmul.f32.gmra.mxu0 %v253
    %v362 = vpop.f32.mrf.mxu0
    %v363 = vadd.f32 %v308, %v362
    %364 = vmatmul.f32.gmra.mxu0 %v254
    %v365 = vpop.f32.mrf.mxu0
    %v366 = vadd.f32 %v308, %v365
    %367 = vmatmul.f32.gmra.mxu0 %v255
    %v368 = vpop.f32.mrf.mxu0
    %v369 = vadd.f32 %v308, %v368
    %370 = vmatmul.f32.gmra.mxu0 %v256
    %v371 = vpop.f32.mrf.mxu0
    %v372 = vadd.f32 %v308, %v371
    %373 = vmatmul.f32.gmra.mxu0 %v257
    %v374 = vpop.f32.mrf.mxu0
    %v375 = vadd.f32 %v308, %v374
    %376 = vmatmul.f32.gmra.mxu0 %v258
    %v377 = vpop.f32.mrf.mxu0
    %v378 = vadd.f32 %v308, %v377
    %379 = vmatmul.f32.gmra.mxu0 %v259
    %v380 = vpop.f32.mrf.mxu0
    %v381 = vadd.f32 %v308, %v380
    %382 = vmatmul.f32.gmra.mxu0 %v260
    %v383 = vpop.f32.mrf.mxu0
    %v384 = vadd.f32 %v308, %v383
    %385 = vmatmul.f32.gmra.mxu0 %v261
    %v386 = vpop.f32.mrf.mxu0
    %v387 = vadd.f32 %v308, %v386
    %388 = vmatmul.f32.gmra.mxu0 %v262
    %v389 = vpop.f32.mrf.mxu0
    %v390 = vadd.f32 %v308, %v389
    %391 = vmatmul.f32.gmra.mxu0 %v263
    %v392 = vpop.f32.mrf.mxu0
    %v393 = vadd.f32 %v308, %v392
    %394 = vmatmul.f32.gmra.mxu0 %v264
    %v395 = vpop.f32.mrf.mxu0
    %v396 = vadd.f32 %v308, %v395
    %397 = vmatmul.f32.gmra.mxu0 %v265
    %v398 = vpop.f32.mrf.mxu0
    %v399 = vadd.f32 %v308, %v398
    %400 = vmatmul.f32.gmra.mxu0 %v266
    %v401 = vpop.f32.mrf.mxu0
    %v402 = vadd.f32 %v308, %v401
    %403 = vmatmul.f32.gmra.mxu0 %v267
    %v404 = vpop.f32.mrf.mxu0
    %v405 = vadd.f32 %v308, %v404
    %406 = vmatmul.f32.gmra.mxu0 %v268
    %v407 = vpop.f32.mrf.mxu0
    %v408 = vadd.f32 %v308, %v407
    %409 = vmatmul.f32.gmra.mxu0 %v269
    %v410 = vpop.f32.mrf.mxu0
    %v411 = vadd.f32 %v308, %v410
    %412 = vmatmul.f32.gmra.mxu0 %v270
    %v413 = vpop.f32.mrf.mxu0
    %v414 = vadd.f32 %v308, %v413
    %415 = vmatmul.f32.gmra.mxu0 %v271
    %v416 = vpop.f32.mrf.mxu0
    %v417 = vadd.f32 %v308, %v416
    %418 = vmatmul.f32.gmra.mxu0 %v272
    %v419 = vpop.f32.mrf.mxu0
    %v420 = vadd.f32 %v308, %v419
    %421 = vmatmul.f32.gmra.mxu0 %v273
    %v422 = vpop.f32.mrf.mxu0
    %v423 = vadd.f32 %v308, %v422
    %424 = vdwg.mxu0
    %425 = vmatpush.msra.mxu0 %v305
    %426 = vmatpush.msra.mxu0 %v303
    %427 = vmatpush.msra.mxu0 %v301
    %428 = vmatpush.msra.mxu0 %v299
    %429 = vmatpush.msra.mxu0 %v297
    %430 = vmatpush.msra.mxu0 %v295
    %431 = vmatpush.msra.mxu0 %v293
    %432 = vmatpush.msra.mxu0 %v291
    %433 = vmatpush.msra.mxu0 %v289
    %434 = vmatpush.msra.mxu0 %v287
    %435 = vmatpush.msra.mxu0 %v285
    %436 = vmatpush.msra.mxu0 %v283
    %437 = vmatpush.msra.mxu0 %v281
    %438 = vmatpush.msra.mxu0 %v279
    %439 = vmatpush.msra.mxu0 %v277
    %440 = vmatpush.msra.mxu0 %v275
    %441 = vmatmul.f32.gmra.mxu0 %v242
    %v442 = vpop.f32.mrf.mxu0
    %v443 = vadd.f32 %v309, %v442
    %444 = vmatmul.f32.gmra.mxu0 %v243
    %v445 = vpop.f32.mrf.mxu0
    %v446 = vadd.f32 %v309, %v445
    %447 = vmatmul.f32.gmra.mxu0 %v244
    %v448 = vpop.f32.mrf.mxu0
    %v449 = vadd.f32 %v309, %v448
    %450 = vmatmul.f32.gmra.mxu0 %v245
    %v451 = vpop.f32.mrf.mxu0
    %v452 = vadd.f32 %v309, %v451
    %453 = vmatmul.f32.gmra.mxu0 %v246
    %v454 = vpop.f32.mrf.mxu0
    %v455 = vadd.f32 %v309, %v454
    %456 = vmatmul.f32.gmra.mxu0 %v247
    %v457 = vpop.f32.mrf.mxu0
    %v458 = vadd.f32 %v309, %v457
    %459 = vmatmul.f32.gmra.mxu0 %v248
    %v460 = vpop.f32.mrf.mxu0
    %v461 = vadd.f32 %v309, %v460
    %462 = vmatmul.f32.gmra.mxu0 %v249
    %v463 = vpop.f32.mrf.mxu0
    %v464 = vadd.f32 %v309, %v463
    %465 = vmatmul.f32.gmra.mxu0 %v250
    %v466 = vpop.f32.mrf.mxu0
    %v467 = vadd.f32 %v309, %v466
    %468 = vmatmul.f32.gmra.mxu0 %v251
    %v469 = vpop.f32.mrf.mxu0
    %v470 = vadd.f32 %v309, %v469
    %471 = vmatmul.f32.gmra.mxu0 %v252
    %v472 = vpop.f32.mrf.mxu0
    %v473 = vadd.f32 %v309, %v472
    %474 = vmatmul.f32.gmra.mxu0 %v253
    %v475 = vpop.f32.mrf.mxu0
    %v476 = vadd.f32 %v309, %v475
    %477 = vmatmul.f32.gmra.mxu0 %v254
    %v478 = vpop.f32.mrf.mxu0
    %v479 = vadd.f32 %v309, %v478
    %480 = vmatmul.f32.gmra.mxu0 %v255
    %v481 = vpop.f32.mrf.mxu0
    %v482 = vadd.f32 %v309, %v481
    %483 = vmatmul.f32.gmra.mxu0 %v256
    %v484 = vpop.f32.mrf.mxu0
    %v485 = vadd.f32 %v309, %v484
    %486 = vmatmul.f32.gmra.mxu0 %v257
    %v487 = vpop.f32.mrf.mxu0
    %v488 = vadd.f32 %v309, %v487
    %489 = vmatmul.f32.gmra.mxu0 %v258
    %v490 = vpop.f32.mrf.mxu0
    %v491 = vadd.f32 %v309, %v490
    %492 = vmatmul.f32.gmra.mxu0 %v259
    %v493 = vpop.f32.mrf.mxu0
    %v494 = vadd.f32 %v309, %v493
    %495 = vmatmul.f32.gmra.mxu0 %v260
    %v496 = vpop.f32.mrf.mxu0
    %v497 = vadd.f32 %v309, %v496
    %498 = vmatmul.f32.gmra.mxu0 %v261
    %v499 = vpop.f32.mrf.mxu0
    %v500 = vadd.f32 %v309, %v499
    %501 = vmatmul.f32.gmra.mxu0 %v262
    %v502 = vpop.f32.mrf.mxu0
    %v503 = vadd.f32 %v309, %v502
    %504 = vmatmul.f32.gmra.mxu0 %v263
    %v505 = vpop.f32.mrf.mxu0
    %v506 = vadd.f32 %v309, %v505
    %507 = vmatmul.f32.gmra.mxu0 %v264
    %v508 = vpop.f32.mrf.mxu0
    %v509 = vadd.f32 %v309, %v508
    %510 = vmatmul.f32.gmra.mxu0 %v265
    %v511 = vpop.f32.mrf.mxu0
    %v512 = vadd.f32 %v309, %v511
    %513 = vmatmul.f32.gmra.mxu0 %v266
    %v514 = vpop.f32.mrf.mxu0
    %v515 = vadd.f32 %v309, %v514
    %516 = vmatmul.f32.gmra.mxu0 %v267
    %v517 = vpop.f32.mrf.mxu0
    %v518 = vadd.f32 %v309, %v517
    %519 = vmatmul.f32.gmra.mxu0 %v268
    %v520 = vpop.f32.mrf.mxu0
    %v521 = vadd.f32 %v309, %v520
    %522 = vmatmul.f32.gmra.mxu0 %v269
    %v523 = vpop.f32.mrf.mxu0
    %v524 = vadd.f32 %v309, %v523
    %525 = vmatmul.f32.gmra.mxu0 %v270
    %v526 = vpop.f32.mrf.mxu0
    %v527 = vadd.f32 %v309, %v526
    %528 = vmatmul.f32.gmra.mxu0 %v271
    %v529 = vpop.f32.mrf.mxu0
    %v530 = vadd.f32 %v309, %v529
    %531 = vmatmul.f32.gmra.mxu0 %v272
    %v532 = vpop.f32.mrf.mxu0
    %v533 = vadd.f32 %v309, %v532
    %534 = vmatmul.f32.gmra.mxu0 %v273
    %v535 = vpop.f32.mrf.mxu0
    %v536 = vadd.f32 %v309, %v535
    %537 = vdwg.mxu0
    %v538 = vmul.f32 %v330, %v330
    %v539 = vmul.f32 %v333, %v333
    %v540 = vmul.f32 %v336, %v336
    %v541 = vmul.f32 %v339, %v339
    %v542 = vmul.f32 %v342, %v342
    %v543 = vmul.f32 %v345, %v345
    %v544 = vmul.f32 %v348, %v348
    %v545 = vmul.f32 %v351, %v351
    %v546 = vmul.f32 %v354, %v354
    %v547 = vmul.f32 %v357, %v357
    %v548 = vmul.f32 %v360, %v360
    %v549 = vmul.f32 %v363, %v363
    %v550 = vmul.f32 %v366, %v366
    %v551 = vmul.f32 %v369, %v369
    %v552 = vmul.f32 %v372, %v372
    %v553 = vmul.f32 %v375, %v375
    %v554 = vmul.f32 %v378, %v378
    %v555 = vmul.f32 %v381, %v381
    %v556 = vmul.f32 %v384, %v384
    %v557 = vmul.f32 %v387, %v387
    %v558 = vmul.f32 %v390, %v390
    %v559 = vmul.f32 %v393, %v393
    %v560 = vmul.f32 %v396, %v396
    %v561 = vmul.f32 %v399, %v399
    %v562 = vmul.f32 %v402, %v402
    %v563 = vmul.f32 %v405, %v405
    %v564 = vmul.f32 %v408, %v408
    %v565 = vmul.f32 %v411, %v411
    %v566 = vmul.f32 %v414, %v414
    %v567 = vmul.f32 %v417, %v417
    %v568 = vmul.f32 %v420, %v420
    %v569 = vmul.f32 %v423, %v423
    %v570 = vld [vmem:[#allocation10] sm:$0xff]
    %v571 = vld [vmem:[#allocation10 + $0x8] sm:$0xff]
    %v572 = vld [vmem:[#allocation10 + $0x10] sm:$0xff]
    %v573 = vld [vmem:[#allocation10 + $0x18] sm:$0xff]
    %v574 = vld [vmem:[#allocation10 + $0x20] sm:$0xff]
    %v575 = vld [vmem:[#allocation10 + $0x28] sm:$0xff]
    %v576 = vld [vmem:[#allocation10 + $0x30] sm:$0xff]
    %v577 = vld [vmem:[#allocation10 + $0x38] sm:$0xff]
    %v578 = vld [vmem:[#allocation10 + $0x40] sm:$0xff]
    %v579 = vld [vmem:[#allocation10 + $0x48] sm:$0xff]
    %v580 = vld [vmem:[#allocation10 + $0x50] sm:$0xff]
    %v581 = vld [vmem:[#allocation10 + $0x58] sm:$0xff]
    %v582 = vld [vmem:[#allocation10 + $0x60] sm:$0xff]
    %v583 = vld [vmem:[#allocation10 + $0x68] sm:$0xff]
    %v584 = vld [vmem:[#allocation10 + $0x70] sm:$0xff]
    %v585 = vld [vmem:[#allocation10 + $0x78] sm:$0xff]
    %586 = vmatpush.msra.mxu0 %v585
    %587 = vmatpush.msra.mxu0 %v584
    %588 = vmatpush.msra.mxu0 %v583
    %589 = vmatpush.msra.mxu0 %v582
    %590 = vmatpush.msra.mxu0 %v581
    %591 = vmatpush.msra.mxu0 %v580
    %592 = vmatpush.msra.mxu0 %v579
    %593 = vmatpush.msra.mxu0 %v578
    %594 = vmatpush.msra.mxu0 %v577
    %595 = vmatpush.msra.mxu0 %v576
    %596 = vmatpush.msra.mxu0 %v575
    %597 = vmatpush.msra.mxu0 %v574
    %598 = vmatpush.msra.mxu0 %v573
    %599 = vmatpush.msra.mxu0 %v572
    %600 = vmatpush.msra.mxu0 %v571
    %601 = vmatpush.msra.mxu0 %v570
    %602 = vmatmul.f32.gmra.mxu0 %v538
    %v603 = vpop.f32.mrf.mxu0
    %v604 = vadd.f32 0.0, %v603
    %605 = vmatmul.f32.gmra.mxu0 %v539
    %v606 = vpop.f32.mrf.mxu0
    %v607 = vadd.f32 0.0, %v606
    %608 = vmatmul.f32.gmra.mxu0 %v540
    %v609 = vpop.f32.mrf.mxu0
    %v610 = vadd.f32 0.0, %v609
    %611 = vmatmul.f32.gmra.mxu0 %v541
    %v612 = vpop.f32.mrf.mxu0
    %v613 = vadd.f32 0.0, %v612
    %614 = vmatmul.f32.gmra.mxu0 %v542
    %v615 = vpop.f32.mrf.mxu0
    %v616 = vadd.f32 0.0, %v615
    %617 = vmatmul.f32.gmra.mxu0 %v543
    %v618 = vpop.f32.mrf.mxu0
    %v619 = vadd.f32 0.0, %v618
    %620 = vmatmul.f32.gmra.mxu0 %v544
    %v621 = vpop.f32.mrf.mxu0
    %v622 = vadd.f32 0.0, %v621
    %623 = vmatmul.f32.gmra.mxu0 %v545
    %v624 = vpop.f32.mrf.mxu0
    %v625 = vadd.f32 0.0, %v624
    %626 = vmatmul.f32.gmra.mxu0 %v546
    %v627 = vpop.f32.mrf.mxu0
    %v628 = vadd.f32 0.0, %v627
    %629 = vmatmul.f32.gmra.mxu0 %v547
    %v630 = vpop.f32.mrf.mxu0
    %v631 = vadd.f32 0.0, %v630
    %632 = vmatmul.f32.gmra.mxu0 %v548
    %v633 = vpop.f32.mrf.mxu0
    %v634 = vadd.f32 0.0, %v633
    %635 = vmatmul.f32.gmra.mxu0 %v549
    %v636 = vpop.f32.mrf.mxu0
    %v637 = vadd.f32 0.0, %v636
    %638 = vmatmul.f32.gmra.mxu0 %v550
    %v639 = vpop.f32.mrf.mxu0
    %v640 = vadd.f32 0.0, %v639
    %641 = vmatmul.f32.gmra.mxu0 %v551
    %v642 = vpop.f32.mrf.mxu0
    %v643 = vadd.f32 0.0, %v642
    %644 = vmatmul.f32.gmra.mxu0 %v552
    %v645 = vpop.f32.mrf.mxu0
    %v646 = vadd.f32 0.0, %v645
    %647 = vmatmul.f32.gmra.mxu0 %v553
    %v648 = vpop.f32.mrf.mxu0
    %v649 = vadd.f32 0.0, %v648
    %650 = vmatmul.f32.gmra.mxu0 %v554
    %v651 = vpop.f32.mrf.mxu0
    %v652 = vadd.f32 0.0, %v651
    %653 = vmatmul.f32.gmra.mxu0 %v555
    %v654 = vpop.f32.mrf.mxu0
    %v655 = vadd.f32 0.0, %v654
    %656 = vmatmul.f32.gmra.mxu0 %v556
    %v657 = vpop.f32.mrf.mxu0
    %v658 = vadd.f32 0.0, %v657
    %659 = vmatmul.f32.gmra.mxu0 %v557
    %v660 = vpop.f32.mrf.mxu0
    %v661 = vadd.f32 0.0, %v660
    %662 = vmatmul.f32.gmra.mxu0 %v558
    %v663 = vpop.f32.mrf.mxu0
    %v664 = vadd.f32 0.0, %v663
    %665 = vmatmul.f32.gmra.mxu0 %v559
    %v666 = vpop.f32.mrf.mxu0
    %v667 = vadd.f32 0.0, %v666
    %668 = vmatmul.f32.gmra.mxu0 %v560
    %v669 = vpop.f32.mrf.mxu0
    %v670 = vadd.f32 0.0, %v669
    %671 = vmatmul.f32.gmra.mxu0 %v561
    %v672 = vpop.f32.mrf.mxu0
    %v673 = vadd.f32 0.0, %v672
    %674 = vmatmul.f32.gmra.mxu0 %v562
    %v675 = vpop.f32.mrf.mxu0
    %v676 = vadd.f32 0.0, %v675
    %677 = vmatmul.f32.gmra.mxu0 %v563
    %v678 = vpop.f32.mrf.mxu0
    %v679 = vadd.f32 0.0, %v678
    %680 = vmatmul.f32.gmra.mxu0 %v564
    %v681 = vpop.f32.mrf.mxu0
    %v682 = vadd.f32 0.0, %v681
    %683 = vmatmul.f32.gmra.mxu0 %v565
    %v684 = vpop.f32.mrf.mxu0
    %v685 = vadd.f32 0.0, %v684
    %686 = vmatmul.f32.gmra.mxu0 %v566
    %v687 = vpop.f32.mrf.mxu0
    %v688 = vadd.f32 0.0, %v687
    %689 = vmatmul.f32.gmra.mxu0 %v567
    %v690 = vpop.f32.mrf.mxu0
    %v691 = vadd.f32 0.0, %v690
    %692 = vmatmul.f32.gmra.mxu0 %v568
    %v693 = vpop.f32.mrf.mxu0
    %v694 = vadd.f32 0.0, %v693
    %695 = vmatmul.f32.gmra.mxu0 %v569
    %v696 = vpop.f32.mrf.mxu0
    %v697 = vadd.f32 0.0, %v696
    %698 = vdwg.mxu0
    %v699 = vmax.f32 %v604, 1e-24
    %v700 = vmax.f32 %v607, 1e-24
    %v701 = vmax.f32 %v610, 1e-24
    %v702 = vmax.f32 %v613, 1e-24
    %v703 = vmax.f32 %v616, 1e-24
    %v704 = vmax.f32 %v619, 1e-24
    %v705 = vmax.f32 %v622, 1e-24
    %v706 = vmax.f32 %v625, 1e-24
    %v707 = vmax.f32 %v628, 1e-24
    %v708 = vmax.f32 %v631, 1e-24
    %v709 = vmax.f32 %v634, 1e-24
    %v710 = vmax.f32 %v637, 1e-24
    %v711 = vmax.f32 %v640, 1e-24
    %v712 = vmax.f32 %v643, 1e-24
    %v713 = vmax.f32 %v646, 1e-24
    %v714 = vmax.f32 %v649, 1e-24
    %v715 = vmax.f32 %v652, 1e-24
    %v716 = vmax.f32 %v655, 1e-24
    %v717 = vmax.f32 %v658, 1e-24
    %v718 = vmax.f32 %v661, 1e-24
    %v719 = vmax.f32 %v664, 1e-24
    %v720 = vmax.f32 %v667, 1e-24
    %v721 = vmax.f32 %v670, 1e-24
    %v722 = vmax.f32 %v673, 1e-24
    %v723 = vmax.f32 %v676, 1e-24
    %v724 = vmax.f32 %v679, 1e-24
    %v725 = vmax.f32 %v682, 1e-24
    %v726 = vmax.f32 %v685, 1e-24
    %v727 = vmax.f32 %v688, 1e-24
    %v728 = vmax.f32 %v691, 1e-24
    %v729 = vmax.f32 %v694, 1e-24
    %v730 = vmax.f32 %v697, 1e-24
    %v731 = vrsqrt.pop %v699
    %v732 = vmul.f32 %v731, %v699
    %v733 = vmul.f32 %v732, %v731
    %v734 = vmul.f32 0.5, %v733
    %v735 = vsub.f32 1.5, %v734
    %v736 = vmul.f32 %v731, %v735
    %vm737 = vweird.f32 %v699
    %vm738 = vweird.f32 %v731
    %vm739 = vmor %vm737, %vm738
    %v740 = vsel %vm739, %v731, %v736
    %v741 = vrsqrt.pop %v700
    %v742 = vmul.f32 %v741, %v700
    %v743 = vmul.f32 %v742, %v741
    %v744 = vmul.f32 0.5, %v743
    %v745 = vsub.f32 1.5, %v744
    %v746 = vmul.f32 %v741, %v745
    %vm747 = vweird.f32 %v700
    %vm748 = vweird.f32 %v741
    %vm749 = vmor %vm747, %vm748
    %v750 = vsel %vm749, %v741, %v746
    %v751 = vrsqrt.pop %v701
    %v752 = vmul.f32 %v751, %v701
    %v753 = vmul.f32 %v752, %v751
    %v754 = vmul.f32 0.5, %v753
    %v755 = vsub.f32 1.5, %v754
    %v756 = vmul.f32 %v751, %v755
    %vm757 = vweird.f32 %v701
    %vm758 = vweird.f32 %v751
    %vm759 = vmor %vm757, %vm758
    %v760 = vsel %vm759, %v751, %v756
    %v761 = vrsqrt.pop %v702
    %v762 = vmul.f32 %v761, %v702
    %v763 = vmul.f32 %v762, %v761
    %v764 = vmul.f32 0.5, %v763
    %v765 = vsub.f32 1.5, %v764
    %v766 = vmul.f32 %v761, %v765
    %vm767 = vweird.f32 %v702
    %vm768 = vweird.f32 %v761
    %vm769 = vmor %vm767, %vm768
    %v770 = vsel %vm769, %v761, %v766
    %v771 = vrsqrt.pop %v703
    %v772 = vmul.f32 %v771, %v703
    %v773 = vmul.f32 %v772, %v771
    %v774 = vmul.f32 0.5, %v773
    %v775 = vsub.f32 1.5, %v774
    %v776 = vmul.f32 %v771, %v775
    %vm777 = vweird.f32 %v703
    %vm778 = vweird.f32 %v771
    %vm779 = vmor %vm777, %vm778
    %v780 = vsel %vm779, %v771, %v776
    %v781 = vrsqrt.pop %v704
    %v782 = vmul.f32 %v781, %v704
    %v783 = vmul.f32 %v782, %v781
    %v784 = vmul.f32 0.5, %v783
    %v785 = vsub.f32 1.5, %v784
    %v786 = vmul.f32 %v781, %v785
    %vm787 = vweird.f32 %v704
    %vm788 = vweird.f32 %v781
    %vm789 = vmor %vm787, %vm788
    %v790 = vsel %vm789, %v781, %v786
    %v791 = vrsqrt.pop %v705
    %v792 = vmul.f32 %v791, %v705
    %v793 = vmul.f32 %v792, %v791
    %v794 = vmul.f32 0.5, %v793
    %v795 = vsub.f32 1.5, %v794
    %v796 = vmul.f32 %v791, %v795
    %vm797 = vweird.f32 %v705
    %vm798 = vweird.f32 %v791
    %vm799 = vmor %vm797, %vm798
    %v800 = vsel %vm799, %v791, %v796
    %v801 = vrsqrt.pop %v706
    %v802 = vmul.f32 %v801, %v706
    %v803 = vmul.f32 %v802, %v801
    %v804 = vmul.f32 0.5, %v803
    %v805 = vsub.f32 1.5, %v804
    %v806 = vmul.f32 %v801, %v805
    %vm807 = vweird.f32 %v706
    %vm808 = vweird.f32 %v801
    %vm809 = vmor %vm807, %vm808
    %v810 = vsel %vm809, %v801, %v806
    %v811 = vrsqrt.pop %v707
    %v812 = vmul.f32 %v811, %v707
    %v813 = vmul.f32 %v812, %v811
    %v814 = vmul.f32 0.5, %v813
    %v815 = vsub.f32 1.5, %v814
    %v816 = vmul.f32 %v811, %v815
    %vm817 = vweird.f32 %v707
    %vm818 = vweird.f32 %v811
    %vm819 = vmor %vm817, %vm818
    %v820 = vsel %vm819, %v811, %v816
    %v821 = vrsqrt.pop %v708
    %v822 = vmul.f32 %v821, %v708
    %v823 = vmul.f32 %v822, %v821
    %v824 = vmul.f32 0.5, %v823
    %v825 = vsub.f32 1.5, %v824
    %v826 = vmul.f32 %v821, %v825
    %vm827 = vweird.f32 %v708
    %vm828 = vweird.f32 %v821
    %vm829 = vmor %vm827, %vm828
    %v830 = vsel %vm829, %v821, %v826
    %v831 = vrsqrt.pop %v709
    %v832 = vmul.f32 %v831, %v709
    %v833 = vmul.f32 %v832, %v831
    %v834 = vmul.f32 0.5, %v833
    %v835 = vsub.f32 1.5, %v834
    %v836 = vmul.f32 %v831, %v835
    %vm837 = vweird.f32 %v709
    %vm838 = vweird.f32 %v831
    %vm839 = vmor %vm837, %vm838
    %v840 = vsel %vm839, %v831, %v836
    %v841 = vrsqrt.pop %v710
    %v842 = vmul.f32 %v841, %v710
    %v843 = vmul.f32 %v842, %v841
    %v844 = vmul.f32 0.5, %v843
    %v845 = vsub.f32 1.5, %v844
    %v846 = vmul.f32 %v841, %v845
    %vm847 = vweird.f32 %v710
    %vm848 = vweird.f32 %v841
    %vm849 = vmor %vm847, %vm848
    %v850 = vsel %vm849, %v841, %v846
    %v851 = vrsqrt.pop %v711
    %v852 = vmul.f32 %v851, %v711
    %v853 = vmul.f32 %v852, %v851
    %v854 = vmul.f32 0.5, %v853
    %v855 = vsub.f32 1.5, %v854
    %v856 = vmul.f32 %v851, %v855
    %vm857 = vweird.f32 %v711
    %vm858 = vweird.f32 %v851
    %vm859 = vmor %vm857, %vm858
    %v860 = vsel %vm859, %v851, %v856
    %v861 = vrsqrt.pop %v712
    %v862 = vmul.f32 %v861, %v712
    %v863 = vmul.f32 %v862, %v861
    %v864 = vmul.f32 0.5, %v863
    %v865 = vsub.f32 1.5, %v864
    %v866 = vmul.f32 %v861, %v865
    %vm867 = vweird.f32 %v712
    %vm868 = vweird.f32 %v861
    %vm869 = vmor %vm867, %vm868
    %v870 = vsel %vm869, %v861, %v866
    %v871 = vrsqrt.pop %v713
    %v872 = vmul.f32 %v871, %v713
    %v873 = vmul.f32 %v872, %v871
    %v874 = vmul.f32 0.5, %v873
    %v875 = vsub.f32 1.5, %v874
    %v876 = vmul.f32 %v871, %v875
    %vm877 = vweird.f32 %v713
    %vm878 = vweird.f32 %v871
    %vm879 = vmor %vm877, %vm878
    %v880 = vsel %vm879, %v871, %v876
    %v881 = vrsqrt.pop %v714
    %v882 = vmul.f32 %v881, %v714
    %v883 = vmul.f32 %v882, %v881
    %v884 = vmul.f32 0.5, %v883
    %v885 = vsub.f32 1.5, %v884
    %v886 = vmul.f32 %v881, %v885
    %vm887 = vweird.f32 %v714
    %vm888 = vweird.f32 %v881
    %vm889 = vmor %vm887, %vm888
    %v890 = vsel %vm889, %v881, %v886
    %v891 = vrsqrt.pop %v715
    %v892 = vmul.f32 %v891, %v715
    %v893 = vmul.f32 %v892, %v891
    %v894 = vmul.f32 0.5, %v893
    %v895 = vsub.f32 1.5, %v894
    %v896 = vmul.f32 %v891, %v895
    %vm897 = vweird.f32 %v715
    %vm898 = vweird.f32 %v891
    %vm899 = vmor %vm897, %vm898
    %v900 = vsel %vm899, %v891, %v896
    %v901 = vrsqrt.pop %v716
    %v902 = vmul.f32 %v901, %v716
    %v903 = vmul.f32 %v902, %v901
    %v904 = vmul.f32 0.5, %v903
    %v905 = vsub.f32 1.5, %v904
    %v906 = vmul.f32 %v901, %v905
    %vm907 = vweird.f32 %v716
    %vm908 = vweird.f32 %v901
    %vm909 = vmor %vm907, %vm908
    %v910 = vsel %vm909, %v901, %v906
    %v911 = vrsqrt.pop %v717
    %v912 = vmul.f32 %v911, %v717
    %v913 = vmul.f32 %v912, %v911
    %v914 = vmul.f32 0.5, %v913
    %v915 = vsub.f32 1.5, %v914
    %v916 = vmul.f32 %v911, %v915
    %vm917 = vweird.f32 %v717
    %vm918 = vweird.f32 %v911
    %vm919 = vmor %vm917, %vm918
    %v920 = vsel %vm919, %v911, %v916
    %v921 = vrsqrt.pop %v718
    %v922 = vmul.f32 %v921, %v718
    %v923 = vmul.f32 %v922, %v921
    %v924 = vmul.f32 0.5, %v923
    %v925 = vsub.f32 1.5, %v924
    %v926 = vmul.f32 %v921, %v925
    %vm927 = vweird.f32 %v718
    %vm928 = vweird.f32 %v921
    %vm929 = vmor %vm927, %vm928
    %v930 = vsel %vm929, %v921, %v926
    %v931 = vrsqrt.pop %v719
    %v932 = vmul.f32 %v931, %v719
    %v933 = vmul.f32 %v932, %v931
    %v934 = vmul.f32 0.5, %v933
    %v935 = vsub.f32 1.5, %v934
    %v936 = vmul.f32 %v931, %v935
    %vm937 = vweird.f32 %v719
    %vm938 = vweird.f32 %v931
    %vm939 = vmor %vm937, %vm938
    %v940 = vsel %vm939, %v931, %v936
    %v941 = vrsqrt.pop %v720
    %v942 = vmul.f32 %v941, %v720
    %v943 = vmul.f32 %v942, %v941
    %v944 = vmul.f32 0.5, %v943
    %v945 = vsub.f32 1.5, %v944
    %v946 = vmul.f32 %v941, %v945
    %vm947 = vweird.f32 %v720
    %vm948 = vweird.f32 %v941
    %vm949 = vmor %vm947, %vm948
    %v950 = vsel %vm949, %v941, %v946
    %v951 = vrsqrt.pop %v721
    %v952 = vmul.f32 %v951, %v721
    %v953 = vmul.f32 %v952, %v951
    %v954 = vmul.f32 0.5, %v953
    %v955 = vsub.f32 1.5, %v954
    %v956 = vmul.f32 %v951, %v955
    %vm957 = vweird.f32 %v721
    %vm958 = vweird.f32 %v951
    %vm959 = vmor %vm957, %vm958
    %v960 = vsel %vm959, %v951, %v956
    %v961 = vrsqrt.pop %v722
    %v962 = vmul.f32 %v961, %v722
    %v963 = vmul.f32 %v962, %v961
    %v964 = vmul.f32 0.5, %v963
    %v965 = vsub.f32 1.5, %v964
    %v966 = vmul.f32 %v961, %v965
    %vm967 = vweird.f32 %v722
    %vm968 = vweird.f32 %v961
    %vm969 = vmor %vm967, %vm968
    %v970 = vsel %vm969, %v961, %v966
    %v971 = vrsqrt.pop %v723
    %v972 = vmul.f32 %v971, %v723
    %v973 = vmul.f32 %v972, %v971
    %v974 = vmul.f32 0.5, %v973
    %v975 = vsub.f32 1.5, %v974
    %v976 = vmul.f32 %v971, %v975
    %vm977 = vweird.f32 %v723
    %vm978 = vweird.f32 %v971
    %vm979 = vmor %vm977, %vm978
    %v980 = vsel %vm979, %v971, %v976
    %v981 = vrsqrt.pop %v724
    %v982 = vmul.f32 %v981, %v724
    %v983 = vmul.f32 %v982, %v981
    %v984 = vmul.f32 0.5, %v983
    %v985 = vsub.f32 1.5, %v984
    %v986 = vmul.f32 %v981, %v985
    %vm987 = vweird.f32 %v724
    %vm988 = vweird.f32 %v981
    %vm989 = vmor %vm987, %vm988
    %v990 = vsel %vm989, %v981, %v986
    %v991 = vrsqrt.pop %v725
    %v992 = vmul.f32 %v991, %v725
    %v993 = vmul.f32 %v992, %v991
    %v994 = vmul.f32 0.5, %v993
    %v995 = vsub.f32 1.5, %v994
    %v996 = vmul.f32 %v991, %v995
    %vm997 = vweird.f32 %v725
    %vm998 = vweird.f32 %v991
    %vm999 = vmor %vm997, %vm998
    %v1000 = vsel %vm999, %v991, %v996
    %v1001 = vrsqrt.pop %v726
    %v1002 = vmul.f32 %v1001, %v726
    %v1003 = vmul.f32 %v1002, %v1001
    %v1004 = vmul.f32 0.5, %v1003
    %v1005 = vsub.f32 1.5, %v1004
    %v1006 = vmul.f32 %v1001, %v1005
    %vm1007 = vweird.f32 %v726
    %vm1008 = vweird.f32 %v1001
    %vm1009 = vmor %vm1007, %vm1008
    %v1010 = vsel %vm1009, %v1001, %v1006
    %v1011 = vrsqrt.pop %v727
    %v1012 = vmul.f32 %v1011, %v727
    %v1013 = vmul.f32 %v1012, %v1011
    %v1014 = vmul.f32 0.5, %v1013
    %v1015 = vsub.f32 1.5, %v1014
    %v1016 = vmul.f32 %v1011, %v1015
    %vm1017 = vweird.f32 %v727
    %vm1018 = vweird.f32 %v1011
    %vm1019 = vmor %vm1017, %vm1018
    %v1020 = vsel %vm1019, %v1011, %v1016
    %v1021 = vrsqrt.pop %v728
    %v1022 = vmul.f32 %v1021, %v728
    %v1023 = vmul.f32 %v1022, %v1021
    %v1024 = vmul.f32 0.5, %v1023
    %v1025 = vsub.f32 1.5, %v1024
    %v1026 = vmul.f32 %v1021, %v1025
    %vm1027 = vweird.f32 %v728
    %vm1028 = vweird.f32 %v1021
    %vm1029 = vmor %vm1027, %vm1028
    %v1030 = vsel %vm1029, %v1021, %v1026
    %v1031 = vrsqrt.pop %v729
    %v1032 = vmul.f32 %v1031, %v729
    %v1033 = vmul.f32 %v1032, %v1031
    %v1034 = vmul.f32 0.5, %v1033
    %v1035 = vsub.f32 1.5, %v1034
    %v1036 = vmul.f32 %v1031, %v1035
    %vm1037 = vweird.f32 %v729
    %vm1038 = vweird.f32 %v1031
    %vm1039 = vmor %vm1037, %vm1038
    %v1040 = vsel %vm1039, %v1031, %v1036
    %v1041 = vrsqrt.pop %v730
    %v1042 = vmul.f32 %v1041, %v730
    %v1043 = vmul.f32 %v1042, %v1041
    %v1044 = vmul.f32 0.5, %v1043
    %v1045 = vsub.f32 1.5, %v1044
    %v1046 = vmul.f32 %v1041, %v1045
    %vm1047 = vweird.f32 %v730
    %vm1048 = vweird.f32 %v1041
    %vm1049 = vmor %vm1047, %vm1048
    %v1050 = vsel %vm1049, %v1041, %v1046
    %v1051 = vmul.f32 %v330, %v740
    %v1052 = vmul.f32 %v333, %v750
    %v1053 = vmul.f32 %v336, %v760
    %v1054 = vmul.f32 %v339, %v770
    %v1055 = vmul.f32 %v342, %v780
    %v1056 = vmul.f32 %v345, %v790
    %v1057 = vmul.f32 %v348, %v800
    %v1058 = vmul.f32 %v351, %v810
    %v1059 = vmul.f32 %v354, %v820
    %v1060 = vmul.f32 %v357, %v830
    %v1061 = vmul.f32 %v360, %v840
    %v1062 = vmul.f32 %v363, %v850
    %v1063 = vmul.f32 %v366, %v860
    %v1064 = vmul.f32 %v369, %v870
    %v1065 = vmul.f32 %v372, %v880
    %v1066 = vmul.f32 %v375, %v890
    %v1067 = vmul.f32 %v378, %v900
    %v1068 = vmul.f32 %v381, %v910
    %v1069 = vmul.f32 %v384, %v920
    %v1070 = vmul.f32 %v387, %v930
    %v1071 = vmul.f32 %v390, %v940
    %v1072 = vmul.f32 %v393, %v950
    %v1073 = vmul.f32 %v396, %v960
    %v1074 = vmul.f32 %v399, %v970
    %v1075 = vmul.f32 %v402, %v980
    %v1076 = vmul.f32 %v405, %v990
    %v1077 = vmul.f32 %v408, %v1000
    %v1078 = vmul.f32 %v411, %v1010
    %v1079 = vmul.f32 %v414, %v1020
    %v1080 = vmul.f32 %v417, %v1030
    %v1081 = vmul.f32 %v420, %v1040
    %v1082 = vmul.f32 %v423, %v1050
    %1083 = vst [vmem:[#allocation11] sm:$0xff] %v1051
    %1084 = vst [vmem:[#allocation11 + $0x8] sm:$0xff] %v1052
    %1085 = vst [vmem:[#allocation11 + $0x10] sm:$0xff] %v1053
    %1086 = vst [vmem:[#allocation11 + $0x18] sm:$0xff] %v1054
    %1087 = vst [vmem:[#allocation11 + $0x20] sm:$0xff] %v1055
    %1088 = vst [vmem:[#allocation11 + $0x28] sm:$0xff] %v1056
    %1089 = vst [vmem:[#allocation11 + $0x30] sm:$0xff] %v1057
    %1090 = vst [vmem:[#allocation11 + $0x38] sm:$0xff] %v1058
    %1091 = vst [vmem:[#allocation11 + $0x40] sm:$0xff] %v1059
    %1092 = vst [vmem:[#allocation11 + $0x48] sm:$0xff] %v1060
    %1093 = vst [vmem:[#allocation11 + $0x50] sm:$0xff] %v1061
    %1094 = vst [vmem:[#allocation11 + $0x58] sm:$0xff] %v1062
    %1095 = vst [vmem:[#allocation11 + $0x60] sm:$0xff] %v1063
    %1096 = vst [vmem:[#allocation11 + $0x68] sm:$0xff] %v1064
    %1097 = vst [vmem:[#allocation11 + $0x70] sm:$0xff] %v1065
    %1098 = vst [vmem:[#allocation11 + $0x78] sm:$0xff] %v1066
    %1099 = vst [vmem:[#allocation11 + $0x80] sm:$0xff] %v1067
    %1100 = vst [vmem:[#allocation11 + $0x88] sm:$0xff] %v1068
    %1101 = vst [vmem:[#allocation11 + $0x90] sm:$0xff] %v1069
    %1102 = vst [vmem:[#allocation11 + $0x98] sm:$0xff] %v1070
    %1103 = vst [vmem:[#allocation11 + $0xa0] sm:$0xff] %v1071
    %1104 = vst [vmem:[#allocation11 + $0xa8] sm:$0xff] %v1072
    %1105 = vst [vmem:[#allocation11 + $0xb0] sm:$0xff] %v1073
    %1106 = vst [vmem:[#allocation11 + $0xb8] sm:$0xff] %v1074
    %1107 = vst [vmem:[#allocation11 + $0xc0] sm:$0xff] %v1075
    %1108 = vst [vmem:[#allocation11 + $0xc8] sm:$0xff] %v1076
    %1109 = vst [vmem:[#allocation11 + $0xd0] sm:$0xff] %v1077
    %1110 = vst [vmem:[#allocation11 + $0xd8] sm:$0xff] %v1078
    %1111 = vst [vmem:[#allocation11 + $0xe0] sm:$0xff] %v1079
    %1112 = vst [vmem:[#allocation11 + $0xe8] sm:$0xff] %v1080
    %1113 = vst [vmem:[#allocation11 + $0xf0] sm:$0xff] %v1081
    %1114 = vst [vmem:[#allocation11 + $0xf8] sm:$0xff] %v1082
    %1115 = vst [vmem:[#allocation12] sm:$0xff] %v443
    %1116 = vst [vmem:[#allocation12 + $0x8] sm:$0xff] %v446
    %1117 = vst [vmem:[#allocation12 + $0x10] sm:$0xff] %v449
    %1118 = vst [vmem:[#allocation12 + $0x18] sm:$0xff] %v452
    %1119 = vst [vmem:[#allocation12 + $0x20] sm:$0xff] %v455
    %1120 = vst [vmem:[#allocation12 + $0x28] sm:$0xff] %v458
    %1121 = vst [vmem:[#allocation12 + $0x30] sm:$0xff] %v461
    %1122 = vst [vmem:[#allocation12 + $0x38] sm:$0xff] %v464
    %1123 = vst [vmem:[#allocation12 + $0x40] sm:$0xff] %v467
    %1124 = vst [vmem:[#allocation12 + $0x48] sm:$0xff] %v470
    %1125 = vst [vmem:[#allocation12 + $0x50] sm:$0xff] %v473
    %1126 = vst [vmem:[#allocation12 + $0x58] sm:$0xff] %v476
    %1127 = vst [vmem:[#allocation12 + $0x60] sm:$0xff] %v479
    %1128 = vst [vmem:[#allocation12 + $0x68] sm:$0xff] %v482
    %1129 = vst [vmem:[#allocation12 + $0x70] sm:$0xff] %v485
    %1130 = vst [vmem:[#allocation12 + $0x78] sm:$0xff] %v488
    %1131 = vst [vmem:[#allocation12 + $0x80] sm:$0xff] %v491
    %1132 = vst [vmem:[#allocation12 + $0x88] sm:$0xff] %v494
    %1133 = vst [vmem:[#allocation12 + $0x90] sm:$0xff] %v497
    %1134 = vst [vmem:[#allocation12 + $0x98] sm:$0xff] %v500
    %1135 = vst [vmem:[#allocation12 + $0xa0] sm:$0xff] %v503
    %1136 = vst [vmem:[#allocation12 + $0xa8] sm:$0xff] %v506
    %1137 = vst [vmem:[#allocation12 + $0xb0] sm:$0xff] %v509
    %1138 = vst [vmem:[#allocation12 + $0xb8] sm:$0xff] %v512
    %1139 = vst [vmem:[#allocation12 + $0xc0] sm:$0xff] %v515
    %1140 = vst [vmem:[#allocation12 + $0xc8] sm:$0xff] %v518
    %1141 = vst [vmem:[#allocation12 + $0xd0] sm:$0xff] %v521
    %1142 = vst [vmem:[#allocation12 + $0xd8] sm:$0xff] %v524
    %1143 = vst [vmem:[#allocation12 + $0xe0] sm:$0xff] %v527
    %1144 = vst [vmem:[#allocation12 + $0xe8] sm:$0xff] %v530
    %1145 = vst [vmem:[#allocation12 + $0xf0] sm:$0xff] %v533
    %1146 = vst [vmem:[#allocation12 + $0xf8] sm:$0xff] %v536
    // Predicated region
    $region50: #{tpu_custom_call.1} parent=1 // pred_check
      _
    $region51: #{tpu_custom_call.1} parent=1 // pred_check_branch
      %1148 = sbr.rel (0) target = $region53
    $region52: #{tpu_custom_call.1} parent=1 // pred_region
      %1150 = vsyncadd [#allocation4], 0
      %s1151 = sshll.u32 [#allocation11], 4
      %s1152 = int_to_ptr.vmem [resolvable:$true] %s1151
      %s1153 = sshll.u32 %s7, 4
      %s1154 = int_to_ptr.hbm [resolvable:$true] %s1153
      %1159 = dma.vmem_to_hbm [thread:$0]  %s1152, 4096, %s1154, [#allocation4], 128, 128, 8
    $region53: #{tpu_custom_call.1} parent=1 // pred_fallthru
      _
    // Predicated region
    $region54: #{tpu_custom_call.1} parent=1 // pred_check
      _
    $region55: #{tpu_custom_call.1} parent=1 // pred_check_branch
      %1161 = sbr.rel (0) target = $region57
    $region56: #{tpu_custom_call.1} parent=1 // pred_region
      %1163 = vsyncadd [#allocation13], 0
      %s1164 = sshll.u32 [#allocation12], 4
      %s1165 = int_to_ptr.vmem [resolvable:$true] %s1164
      %s1166 = sshll.u32 %s8, 4
      %s1167 = int_to_ptr.hbm [resolvable:$true] %s1166
      %1172 = dma.vmem_to_hbm [thread:$0]  %s1165, 4096, %s1167, [#allocation13], 128, 128, 8
    $region57: #{tpu_custom_call.1} parent=1 // pred_fallthru
      _
    // Predicated region
    $region58: #{tpu_custom_call.1} parent=1 // pred_check
      _
    $region59: #{tpu_custom_call.1} parent=1 // pred_check_branch
      %1174 = sbr.rel (0) target = $region61
    $region60: #{tpu_custom_call.1} parent=1 // pred_region
      %1176 = dma.done [#allocation4], 4096
    $region61: #{tpu_custom_call.1} parent=1 // pred_fallthru
      _
    // Predicated region
    $region62: #{tpu_custom_call.1} parent=1 // pred_check
      _
    $region63: #{tpu_custom_call.1} parent=1 // pred_check_branch
      %1178 = sbr.rel (0) target = $region65
    $region64: #{tpu_custom_call.1} parent=1 // pred_region
      %1180 = dma.done [#allocation13], 4096
    $region65: #{tpu_custom_call.1} parent=1 // pred_fallthru
      _
    %1181 = vsyncpa [#allocation3], 1
    %1182 = vsyncpa [#allocation6], 1
    %1183 = vsyncpa [#allocation9], 1
    %1184 = vsyncpa [#allocation4], 1
    %1185 = vsyncpa [#allocation13], 1

</llo_original>
